<compile_context>
chip_gen: v6e
topology: v6e:2x2x1
jax: 0.10.0
libtpu: 0.0.40
codegen_flags: <defaults>
</compile_context>

<pallas_src>
import functools

import jax
import jax.numpy as jnp
from jax.experimental import pallas as pl
from jax.experimental.pallas import tpu as pltpu


# ------------------------------ helpers --------------------------------------


def _rmsnorm_f32(x, g, eps):
    x = x.astype(jnp.float32)
    ms = jnp.mean(x * x, axis=-1, keepdims=True)
    return x * jax.lax.rsqrt(ms + eps) * g


# ------------------------------ kernels --------------------------------------


def qkv_proj_kernel(x_ref, g_ref, wqkv_ref, bqkv_ref,
                    q_ref, k_ref, v_ref, *, n_heads, eps):
    """RMSNorm(x) -> fused QKV projection, written in (H, T, Dh) bf16 layout.

    The attention scale is already folded into the Q weight/bias on the host.
    """
    x = x_ref[0]                                   # (TS, D) f32
    ts, d = x.shape
    dh = d // n_heads
    xn = _rmsnorm_f32(x, g_ref[0], eps).astype(jnp.bfloat16)

    y = jnp.dot(xn, wqkv_ref[...],
                preferred_element_type=jnp.float32) + bqkv_ref[0]   # (TS, 3D) f32
    y = y.astype(jnp.bfloat16).reshape(ts, 3 * n_heads, dh)
    y = jnp.swapaxes(y, 0, 1)                      # (3H, TS, Dh) bf16

    q_ref[0] = y[:n_heads]
    k_ref[0] = y[n_heads:2 * n_heads]
    v_ref[0] = y[2 * n_heads:]


def flash_attn_kernel(x_ref, q_ref, k_ref, v_ref, wo_ref, bo_ref, h_ref,
                      m_ref, l_ref, acc_ref, *, tq, tk):
    """Online-softmax causal attention over KV tiles + out-proj + residual."""
    qi = pl.program_id(1)
    ki = pl.program_id(2)
    nk = pl.num_programs(2)
    q_off = qi * tq
    k_off = ki * tk

    @pl.when(ki == 0)
    def _init():
        m_ref[...] = jnp.full_like(m_ref, -jnp.inf)
        l_ref[...] = jnp.zeros_like(l_ref)
        acc_ref[...] = jnp.zeros_like(acc_ref)

    @pl.when(k_off < q_off + tq)          # skip KV tiles entirely in the future
    def _compute():
        q = q_ref[0]                      # (H, TQ, Dh) bf16, pre-scaled
        k = k_ref[0]                      # (H, TK, Dh) bf16
        v = v_ref[0]                      # (H, TK, Dh) bf16

        s = jnp.einsum('hqd,hkd->hqk', q, k,
                       preferred_element_type=jnp.float32)          # (H,TQ,TK)
        row = jax.lax.broadcasted_iota(jnp.int32, (tq, tk), 0) + q_off
        col = jax.lax.broadcasted_iota(jnp.int32, (tq, tk), 1) + k_off
        s = jnp.where((col <= row)[None], s, -1e30)

        m_prev = m_ref[...]
        m_new = jnp.maximum(m_prev, jnp.max(s, axis=-1, keepdims=True))
        alpha = jnp.exp(m_prev - m_new)
        p = jnp.exp(s - m_new)
        l_ref[...] = alpha * l_ref[...] + jnp.sum(p, axis=-1, keepdims=True)
        acc_ref[...] = alpha * acc_ref[...] + jnp.einsum(
            'hqk,hkd->hqd', p.astype(jnp.bfloat16), v,
            preferred_element_type=jnp.float32)
        m_ref[...] = m_new

    @pl.when(ki == nk - 1)
    def _finalize():
        o = acc_ref[...] * pl.reciprocal(l_ref[...], approx=True)   # (H,TQ,Dh) f32
        h_heads, t_q, d_h = o.shape
        o2 = jnp.swapaxes(o.astype(jnp.bfloat16), 0, 1).reshape(t_q, h_heads * d_h)
        attn = jnp.dot(o2, wo_ref[...],
                       preferred_element_type=jnp.float32) + bo_ref[0]
        h_ref[0] = (x_ref[0] + attn).astype(h_ref.dtype)


def mlp_kernel(h_ref, g_ref, w1_ref, b1_ref, w2_ref, b2_ref, o_ref,
               hn_ref, acc_ref, *, eps):
    """RMSNorm(h) -> W1 -> GELU -> W2 (tiled over Dff with accumulator) -> +h."""
    f = pl.program_id(2)

    @pl.when(f == 0)
    def _init():
        hn_ref[...] = _rmsnorm_f32(h_ref[0], g_ref[0], eps).astype(jnp.bfloat16)
        acc_ref[...] = jnp.zeros_like(acc_ref)

    u = jnp.dot(hn_ref[...], w1_ref[...],
                preferred_element_type=jnp.float32) + b1_ref[0]
    u = jax.nn.gelu(u, approximate=True)
    acc_ref[...] += jnp.dot(u.astype(jnp.bfloat16), w2_ref[...],
                            preferred_element_type=jnp.float32)

    @pl.when(f == pl.num_programs(2) - 1)
    def _finalize():
        o_ref[0] = (h_ref[0] + acc_ref[...] + b2_ref[0]).astype(o_ref.dtype)


# ------------------------------ wrapper ---------------------------------------


def block_forward(x, params, *, n_heads, eps, ts=None, tq=None, tk=None, tf=None):
    B, S, D = x.shape
    Dff = params["w1"].shape[1]
    Dh = D // n_heads

    ts = ts or S
    tq = tq or S
    tk = tk or S
    tf = tf or Dff
    assert D % n_heads == 0
    assert S % ts == 0 and S % tq == 0 and S % tk == 0 and Dff % tf == 0

    bf16 = jnp.bfloat16
    scale = 1.0 / (Dh ** 0.5)

    # Fold the attention scale into the Q projection (f32 math, then bf16 cast),
    # and fuse Q/K/V into a single (D, 3D) weight for one larger MXU matmul.
    wqkv = jnp.concatenate(
        [params["wq"] * scale, params["wk"], params["wv"]], axis=1).astype(bf16)
    bqkv = jnp.concatenate(
        [params["bq"] * scale, params["bk"], params["bv"]], axis=1)      # f32
    wo = params["wo"].astype(bf16)
    w1 = params["w1"].astype(bf16)
    w2 = params["w2"].astype(bf16)

    vmem_lim = 48 * 1024 * 1024   # explicit, with headroom under v7x's 64 MiB

    # ---------------- kernel 1: RMSNorm + fused QKV projection ----------------
    qkv_out_spec = lambda: pl.BlockSpec((1, n_heads, ts, Dh),
                                        lambda b, s: (b, 0, s, 0))
    q, k, v = pl.pallas_call(
        functools.partial(qkv_proj_kernel, n_heads=n_heads, eps=eps),
        out_shape=(jax.ShapeDtypeStruct((B, n_heads, S, Dh), bf16),) * 3,
        grid=(B, S // ts),
        in_specs=[
            pl.BlockSpec((1, ts, D), lambda b, s: (b, s, 0)),
            pl.BlockSpec((1, D), lambda b, s: (0, 0)),
            pl.BlockSpec((D, 3 * D), lambda b, s: (0, 0)),
            pl.BlockSpec((1, 3 * D), lambda b, s: (0, 0)),
        ],
        out_specs=(qkv_out_spec(), qkv_out_spec(), qkv_out_spec()),
        compiler_params=pltpu.CompilerParams(
            dimension_semantics=("parallel", "parallel"),
            vmem_limit_bytes=vmem_lim),
    )(x, params["g1"], wqkv, bqkv)

    # ---------------- kernel 2: flash attention + out-proj + residual ---------
    h = pl.pallas_call(
        functools.partial(flash_attn_kernel, tq=tq, tk=tk),
        out_shape=jax.ShapeDtypeStruct((B, S, D), x.dtype),
        grid=(B, S // tq, S // tk),
        in_specs=[
            pl.BlockSpec((1, tq, D), lambda b, i, j: (b, i, 0)),
            pl.BlockSpec((1, n_heads, tq, Dh), lambda b, i, j: (b, 0, i, 0)),
            pl.BlockSpec((1, n_heads, tk, Dh), lambda b, i, j: (b, 0, j, 0)),
            pl.BlockSpec((1, n_heads, tk, Dh), lambda b, i, j: (b, 0, j, 0)),
            pl.BlockSpec((D, D), lambda b, i, j: (0, 0)),
            pl.BlockSpec((1, D), lambda b, i, j: (0, 0)),
        ],
        out_specs=pl.BlockSpec((1, tq, D), lambda b, i, j: (b, i, 0)),
        scratch_shapes=[
            pltpu.VMEM((n_heads, tq, 1), jnp.float32),     # running max
            pltpu.VMEM((n_heads, tq, 1), jnp.float32),     # running sum
            pltpu.VMEM((n_heads, tq, Dh), jnp.float32),    # output accumulator
        ],
        compiler_params=pltpu.CompilerParams(
            dimension_semantics=("parallel", "parallel", "arbitrary"),
            vmem_limit_bytes=vmem_lim),
    )(x, q, k, v, wo, params["bo"])

    # ---------------- kernel 3: RMSNorm + MLP (Dff-tiled) + residual ----------
    out = pl.pallas_call(
        functools.partial(mlp_kernel, eps=eps),
        out_shape=jax.ShapeDtypeStruct((B, S, D), x.dtype),
        grid=(B, S // ts, Dff // tf),
        in_specs=[
            pl.BlockSpec((1, ts, D), lambda b, s, f: (b, s, 0)),
            pl.BlockSpec((1, D), lambda b, s, f: (0, 0)),
            pl.BlockSpec((D, tf), lambda b, s, f: (0, f)),
            pl.BlockSpec((1, tf), lambda b, s, f: (0, f)),
            pl.BlockSpec((tf, D), lambda b, s, f: (f, 0)),
            pl.BlockSpec((1, D), lambda b, s, f: (0, 0)),
        ],
        out_specs=pl.BlockSpec((1, ts, D), lambda b, s, f: (b, s, 0)),
        scratch_shapes=[
            pltpu.VMEM((ts, D), jnp.bfloat16),   # cached RMSNorm(h)
            pltpu.VMEM((ts, D), jnp.float32),    # MLP output accumulator
        ],
        compiler_params=pltpu.CompilerParams(
            dimension_semantics=("parallel", "parallel", "arbitrary"),
            vmem_limit_bytes=vmem_lim),
    )(h, params["g2"], w1, params["b1"], w2, params["b2"])

    return out


# --------------------------- pure-JAX reference -------------------------------


def block_reference(x, params, *, n_heads, eps):
    def rmsnorm(v, g):
        return v * jax.lax.rsqrt(jnp.mean(v * v, -1, keepdims=True) + eps) * g

    B, S, D = x.shape
    Dh = D // n_heads

    xn = rmsnorm(x, params["g1"][0])
    q = xn @ params["wq"] + params["bq"][0]
    k = xn @ params["wk"] + params["bk"][0]
    v = xn @ params["wv"] + params["bv"][0]
    q = q.reshape(B, S, n_heads, Dh).transpose(0, 2, 1, 3)
    k = k.reshape(B, S, n_heads, Dh).transpose(0, 2, 1, 3)
    v = v.reshape(B, S, n_heads, Dh).transpose(0, 2, 1, 3)
    s = jnp.einsum("bhqd,bhkd->bhqk", q, k) / (Dh ** 0.5)
    causal = jnp.tril(jnp.ones((S, S), bool))
    s = jnp.where(causal, s, -1e30)
    p = jax.nn.softmax(s, axis=-1)
    o = jnp.einsum("bhqk,bhkd->bhqd", p, v).transpose(0, 2, 1, 3).reshape(B, S, D)
    h = x + (o @ params["wo"] + params["bo"][0])

    hn = rmsnorm(h, params["g2"][0])
    u = jax.nn.gelu(hn @ params["w1"] + params["b1"][0], approximate=True)
    return h + (u @ params["w2"] + params["b2"][0])


# ---------------------------------- main ---------------------------------------


if __name__ == "__main__":
    # Small config consistent with the module (hidden divisible by n_heads,
    # MLP expansion factor k_hidden = 4). Tile sizes chosen so every grid axis
    # (batch, seq tiles, KV tiles, Dff tiles) has >1 step.
    B, S, D, H, K_HIDDEN, EPS = 2, 64, 128, 4, 4, 1e-12
    DFF = K_HIDDEN * D

    key = jax.random.PRNGKey(0)
    keys = jax.random.split(key, 16)

    def w(k, shape, scale=0.02):
        return (scale * jax.random.normal(k, shape)).astype(jnp.float32)

    params = {
        "g1": (1.0 + 0.05 * jax.random.normal(keys[8], (1, D))).astype(jnp.float32),
        "g2": (1.0 + 0.05 * jax.random.normal(keys[9], (1, D))).astype(jnp.float32),
        "wq": w(keys[0], (D, D)), "bq": w(keys[10], (1, D)),
        "wk": w(keys[1], (D, D)), "bk": w(keys[11], (1, D)),
        "wv": w(keys[2], (D, D)), "bv": w(keys[12], (1, D)),
        "wo": w(keys[3], (D, D)), "bo": w(keys[13], (1, D)),
        "w1": w(keys[4], (D, DFF)), "b1": w(keys[14], (1, DFF)),
        "w2": w(keys[5], (DFF, D)), "b2": w(keys[15], (1, D)),
    }

    x = jax.random.normal(keys[6], (B, S, D), dtype=jnp.float32)

    out = block_forward(x, params, n_heads=H, eps=EPS, ts=32, tq=32, tk=32, tf=256)
    out = jax.block_until_ready(out)

    ref = block_reference(x, params, n_heads=H, eps=EPS)
    assert out.shape == (B, S, D)
    # bf16 MXU inputs + approx reciprocal vs. f32 reference -> loosened tolerance.
    assert jnp.allclose(out, ref, atol=2e-2, rtol=2e-2), "mismatch vs reference"

    print("KERNEL_OK")
</pallas_src>

<mosaic_0001>
module attributes {stable_mosaic.version = 11 : i64} {
  func.func @qkv_proj_kernel(%arg0: i32, %arg1: i32, %arg2: memref<1x32x128xf32, #tpu.memory_space<vmem>>, %arg3: memref<1x128xf32, #tpu.memory_space<vmem>>, %arg4: memref<128x384xbf16, #tpu.memory_space<vmem>>, %arg5: memref<1x384xf32, #tpu.memory_space<vmem>>, %arg6: memref<1x4x32x32xbf16, #tpu.memory_space<vmem>>, %arg7: memref<1x4x32x32xbf16, #tpu.memory_space<vmem>>, %arg8: memref<1x4x32x32xbf16, #tpu.memory_space<vmem>>) attributes {dimension_semantics = [#tpu.dimension_semantics<parallel>, #tpu.dimension_semantics<parallel>], iteration_bounds = array<i64: 2, 2>, scalar_prefetch = 0 : i64, scratch_operands = 0 : i64, tpu.core_type = #tpu.core_type<tc>, window_params = [{transform_indices = @transform_0, window_bounds = array<i64: 1, 32, 128>}, {pipeline_mode = #tpu.pipeline_mode<synchronous>, transform_indices = @transform_1, window_bounds = array<i64: 1, 128>}, {pipeline_mode = #tpu.pipeline_mode<synchronous>, transform_indices = @transform_2, window_bounds = array<i64: 128, 384>}, {pipeline_mode = #tpu.pipeline_mode<synchronous>, transform_indices = @transform_3, window_bounds = array<i64: 1, 384>}, {transform_indices = @transform_4, window_bounds = array<i64: 1, 4, 32, 32>}, {transform_indices = @transform_5, window_bounds = array<i64: 1, 4, 32, 32>}, {transform_indices = @transform_6, window_bounds = array<i64: 1, 4, 32, 32>}]} {
    %c0 = arith.constant 0 : index
    %c0_0 = arith.constant 0 : index
    %c0_1 = arith.constant 0 : index
    %0 = vector.load %arg2[%c0, %c0_0, %c0_1] : memref<1x32x128xf32, #tpu.memory_space<vmem>>, vector<1x32x128xf32>
    %1 = vector.shape_cast %0 : vector<1x32x128xf32> to vector<32x128xf32>
    %c0_2 = arith.constant 0 : index
    %c0_3 = arith.constant 0 : index
    %2 = vector.load %arg3[%c0_2, %c0_3] : memref<1x128xf32, #tpu.memory_space<vmem>>, vector<1x128xf32>
    %3 = vector.shape_cast %2 : vector<1x128xf32> to vector<128xf32>
    %4 = arith.mulf %1, %1 : vector<32x128xf32>
    %cst = arith.constant dense<0.000000e+00> : vector<32xf32>
    %5 = vector.multi_reduction <add>, %4, %cst [1] : vector<32x128xf32> to vector<32xf32>
    %6 = vector.shape_cast %5 : vector<32xf32> to vector<32x1xf32>
    %cst_4 = arith.constant 1.280000e+02 : f32
    %7 = vector.broadcast %cst_4 : f32 to vector<32x1xf32>
    %8 = arith.divf %6, %7 : vector<32x1xf32>
    %cst_5 = arith.constant 9.99999996E-13 : f32
    %9 = vector.broadcast %cst_5 : f32 to vector<32x1xf32>
    %10 = arith.addf %8, %9 : vector<32x1xf32>
    %11 = math.rsqrt %10 : vector<32x1xf32>
    %12 = vector.broadcast %11 : vector<32x1xf32> to vector<32x128xf32>
    %13 = arith.mulf %1, %12 : vector<32x128xf32>
    %14 = vector.shape_cast %3 : vector<128xf32> to vector<1x128xf32>
    %15 = vector.broadcast %14 : vector<1x128xf32> to vector<32x128xf32>
    %16 = arith.mulf %13, %15 : vector<32x128xf32>
    %17 = arith.truncf %16 : vector<32x128xf32> to vector<32x128xbf16>
    %c0_6 = arith.constant 0 : index
    %c0_7 = arith.constant 0 : index
    %18 = vector.load %arg4[%c0_6, %c0_7] : memref<128x384xbf16, #tpu.memory_space<vmem>>, vector<128x384xbf16>
    %cst_8 = arith.constant dense<0.000000e+00> : vector<32x384xf32>
    %19 = tpu.matmul %17, %18, %cst_8 {dimension_numbers = #tpu.dot_dimension_numbers<[1], [0], [0], [1], [0, 0, 1, 1], [], []>} : vector<32x128xbf16>, vector<128x384xbf16>, vector<32x384xf32> -> vector<32x384xf32>
    %c0_9 = arith.constant 0 : index
    %c0_10 = arith.constant 0 : index
    %20 = vector.load %arg5[%c0_9, %c0_10] : memref<1x384xf32, #tpu.memory_space<vmem>>, vector<1x384xf32>
    %21 = vector.shape_cast %20 : vector<1x384xf32> to vector<384xf32>
    %22 = vector.shape_cast %21 : vector<384xf32> to vector<1x384xf32>
    %23 = vector.broadcast %22 : vector<1x384xf32> to vector<32x384xf32>
    %24 = arith.addf %19, %23 : vector<32x384xf32>
    %25 = arith.truncf %24 : vector<32x384xf32> to vector<32x384xbf16>
    %26 = vector.shape_cast %25 : vector<32x384xbf16> to vector<32x12x32xbf16>
    %27 = tpu.transpose %26, [1, 0, 2] : vector<32x12x32xbf16> -> vector<12x32x32xbf16>
    %28 = vector.extract_strided_slice %27 {offsets = [0, 0, 0], sizes = [4, 32, 32], strides = [1, 1, 1]} : vector<12x32x32xbf16> to vector<4x32x32xbf16>
    %c0_11 = arith.constant 0 : index
    %c0_12 = arith.constant 0 : index
    %c0_13 = arith.constant 0 : index
    %c0_14 = arith.constant 0 : index
    %29 = vector.load %arg6[%c0_11, %c0_12, %c0_13, %c0_14] : memref<1x4x32x32xbf16, #tpu.memory_space<vmem>>, vector<1x4x32x32xbf16>
    %30 = vector.shape_cast %29 : vector<1x4x32x32xbf16> to vector<4x32x32xbf16>
    %31 = vector.shape_cast %28 : vector<4x32x32xbf16> to vector<1x4x32x32xbf16>
    tpu.vector_store %arg6[%c0_11, %c0_12, %c0_13, %c0_14], %31 {strides = array<i32>} : memref<1x4x32x32xbf16, #tpu.memory_space<vmem>>, vector<1x4x32x32xbf16>,
    %32 = vector.extract_strided_slice %27 {offsets = [4, 0, 0], sizes = [4, 32, 32], strides = [1, 1, 1]} : vector<12x32x32xbf16> to vector<4x32x32xbf16>
    %c0_15 = arith.constant 0 : index
    %c0_16 = arith.constant 0 : index
    %c0_17 = arith.constant 0 : index
    %c0_18 = arith.constant 0 : index
    %33 = vector.load %arg7[%c0_15, %c0_16, %c0_17, %c0_18] : memref<1x4x32x32xbf16, #tpu.memory_space<vmem>>, vector<1x4x32x32xbf16>
    %34 = vector.shape_cast %33 : vector<1x4x32x32xbf16> to vector<4x32x32xbf16>
    %35 = vector.shape_cast %32 : vector<4x32x32xbf16> to vector<1x4x32x32xbf16>
    tpu.vector_store %arg7[%c0_15, %c0_16, %c0_17, %c0_18], %35 {strides = array<i32>} : memref<1x4x32x32xbf16, #tpu.memory_space<vmem>>, vector<1x4x32x32xbf16>,
    %36 = vector.extract_strided_slice %27 {offsets = [8, 0, 0], sizes = [4, 32, 32], strides = [1, 1, 1]} : vector<12x32x32xbf16> to vector<4x32x32xbf16>
    %c0_19 = arith.constant 0 : index
    %c0_20 = arith.constant 0 : index
    %c0_21 = arith.constant 0 : index
    %c0_22 = arith.constant 0 : index
    %37 = vector.load %arg8[%c0_19, %c0_20, %c0_21, %c0_22] : memref<1x4x32x32xbf16, #tpu.memory_space<vmem>>, vector<1x4x32x32xbf16>
    %38 = vector.shape_cast %37 : vector<1x4x32x32xbf16> to vector<4x32x32xbf16>
    %39 = vector.shape_cast %36 : vector<4x32x32xbf16> to vector<1x4x32x32xbf16>
    tpu.vector_store %arg8[%c0_19, %c0_20, %c0_21, %c0_22], %39 {strides = array<i32>} : memref<1x4x32x32xbf16, #tpu.memory_space<vmem>>, vector<1x4x32x32xbf16>,
    return
  }
  func.func @transform_0(%arg0: i32, %arg1: i32) -> (i32, i32, i32) {
    %c0_i32 = arith.constant 0 : i32
    %c0_i32_0 = arith.constant 0 : i32
    return %arg0, %arg1, %c0_i32 : i32, i32, i32
  }
  func.func @transform_1(%arg0: i32, %arg1: i32) -> (i32, i32) {
    %c0_i32 = arith.constant 0 : i32
    %c0_i32_0 = arith.constant 0 : i32
    %c0_i32_1 = arith.constant 0 : i32
    return %c0_i32, %c0_i32_0 : i32, i32
  }
  func.func @transform_2(%arg0: i32, %arg1: i32) -> (i32, i32) {
    %c0_i32 = arith.constant 0 : i32
    %c0_i32_0 = arith.constant 0 : i32
    %c0_i32_1 = arith.constant 0 : i32
    return %c0_i32, %c0_i32_0 : i32, i32
  }
  func.func @transform_3(%arg0: i32, %arg1: i32) -> (i32, i32) {
    %c0_i32 = arith.constant 0 : i32
    %c0_i32_0 = arith.constant 0 : i32
    %c0_i32_1 = arith.constant 0 : i32
    return %c0_i32, %c0_i32_0 : i32, i32
  }
  func.func @transform_4(%arg0: i32, %arg1: i32) -> (i32, i32, i32, i32) {
    %c0_i32 = arith.constant 0 : i32
    %c0_i32_0 = arith.constant 0 : i32
    %c0_i32_1 = arith.constant 0 : i32
    return %arg0, %c0_i32, %arg1, %c0_i32_0 : i32, i32, i32, i32
  }
  func.func @transform_5(%arg0: i32, %arg1: i32) -> (i32, i32, i32, i32) {
    %c0_i32 = arith.constant 0 : i32
    %c0_i32_0 = arith.constant 0 : i32
    %c0_i32_1 = arith.constant 0 : i32
    return %arg0, %c0_i32, %arg1, %c0_i32_0 : i32, i32, i32, i32
  }
  func.func @transform_6(%arg0: i32, %arg1: i32) -> (i32, i32, i32, i32) {
    %c0_i32 = arith.constant 0 : i32
    %c0_i32_0 = arith.constant 0 : i32
    %c0_i32_1 = arith.constant 0 : i32
    return %arg0, %c0_i32, %arg1, %c0_i32_0 : i32, i32, i32, i32
  }
}

</mosaic_0001>

<llo_original>
// kernel: tpu_custom_call.1
$region0: #{tpu_custom_call.1}
  #allocation0 [shape = 'u32[]', space=smem, size = 0x4, offset = 0x4, fixed_abs, tag = 'smem constant byte address 0x4 - core index']
  #allocation1 [shape = 'u32[144,128]{1,0:T(1,128)}', space=vmem, size = 0x12000, scoped, tag = 'internal scratch']
  %s0 = inlined_call_operand.hbm [shape: f32[2,64,128], index: 0, kind: input, shape index: {}]
  %s1 = inlined_call_operand.vmem [shape: f32[1,128], index: 1, kind: input, shape index: {}]
  %s2 = inlined_call_operand.hbm [shape: bf16[128,384], index: 2, kind: input, shape index: {}]
  %s3 = inlined_call_operand.vmem [shape: f32[1,384], index: 3, kind: input, shape index: {}]
  %s4 = inlined_call_operand.vmem [shape: bf16[2,4,64,32], index: 4, kind: output, shape index: {0}]
  %s5 = inlined_call_operand.vmem [shape: bf16[2,4,64,32], index: 5, kind: output, shape index: {1}]
  %s6 = inlined_call_operand.vmem [shape: bf16[2,4,64,32], index: 6, kind: output, shape index: {2}]
  %7 = xla_tuple %s4, %s5, %s6
  %s8 = sld [smem:[#allocation0]]
  $region184: #{tpu_custom_call.1} parent=0
    _
  %s10 = ssub.s32 1, %s8
  %s11 = scalar_select 0, %s10, %s8
  $region1: #{tpu_custom_call.1} parent=0
    #allocation2 [shape = 'u8[32768]{0}', space=vmem, size = 0x8000, scoped, tag = 'input window, operand 0']
    #allocation3 [shape = 's32[2]{0}', space=sflag, size = 0x8, scoped, tag = 'scoped memory for tpu_custom_call.1']
    #allocation4 [shape = 'u8[98304]{0}', space=vmem, size = 0x18000, scoped, tag = 'input window, operand 2, single buffered']
    #allocation5 [shape = 's32[1]{0}', space=sflag, size = 0x4, scoped, tag = 'scoped memory for tpu_custom_call.1']
    #allocation6 [shape = 'u8[65536]{0}', space=vmem, size = 0x10000, scoped, tag = 'output window, operand 0']
    #allocation7 [shape = 'u8[65536]{0}', space=vmem, size = 0x10000, scoped, tag = 'output window, operand 1']
    #allocation8 [shape = 'u8[65536]{0}', space=vmem, size = 0x10000, scoped, tag = 'output window, operand 2']
    %12 = vsyncpa [#allocation3], 0
    %s13 = scalar_lea.sflag [#allocation3], 1
    %14 = vsyncpa %s13, 0
    %15 = vsyncpa [#allocation5], 0
    loop: start=0, step=1, limit=6
    $region2: #{tpu_custom_call.1} parent=1 // loop_pre_header
      _
    $region3: #{tpu_custom_call.1} parent=1 // loop_header
      %s17 = sphi 0, %s21
      %p18 = scmp.ge.s32.totalorder %s17, 6
      %s24 = sphi 0, %s36
      %s25 = sphi 0, %s32
      %s26 = sphi 0, %s24
      %s27 = sphi 0, %s25
      %s28 = sphi 0, %s26
      %s29 = sphi 0, %s27
      %s41 = sphi 0, %s43
      %s44 = sphi 0, %s41
      %s45 = sphi 0, %s44
      %s61 = sphi 0, %s45
      %s65 = sphi 0, %s65
      %s67 = sphi 0, %s65
      %s68 = sphi 0, %s67
      %s82 = sphi 0, %s68
      %s86 = sphi 0, %s86
      %s88 = sphi 0, %s86
      %s89 = sphi 0, %s88
      %s103 = sphi 0, %s89
      %s107 = sphi 0, %s107
      %s109 = sphi 0, %s107
      %s110 = sphi 0, %s109
      %s124 = sphi 0, %s110
      %s132 = sphi 0, %s134
      %s135 = sphi 0, %s132
      %s136 = sphi 0, %s135
      %s152 = sphi 0, %s136
      %s160 = sphi 0, %s162
      %s163 = sphi 0, %s160
      %s164 = sphi 0, %s163
      %s180 = sphi 0, %s164
      %s188 = sphi 0, %s190
      %s191 = sphi 0, %s188
      %s192 = sphi 0, %s191
      %s208 = sphi 0, %s192
    $region4: #{tpu_custom_call.1} parent=1 // loop_header_branch
      %20 = sbr.rel (%p18) target = $region8
    $region5: #{tpu_custom_call.1} parent=1 // loop_body
      %s22 = ssub.s32 %s17, 1
      %s23 = ssub.s32 %s17, 2
      %s30 = sadd.s32 1, %s25
      %p31 = scmp.ge.s32.totalorder %s30, 2
      %s32 = scalar_select %p31, 0, %s30
      %s33 = sadd.s32 1, %s24
      %s34 = scalar_select %p31, %s33, %s24
      %p35 = scmp.ge.s32.totalorder %s34, 2
      %s36 = scalar_select %p35, 0, %s34
      %s37 = ssub.s32 %s24, %s36
      %s38 = ssub.s32 %s25, %s32
      %s39 = sor.u32 %s37, %s38
      %p40 = scmp.eq.s32.totalorder %s39, 0
      %s42 = sadd.s32 %s41, 1
      %s43 = scalar_select %p40, %s41, %s42
      %p46 = pneg %p40
      %p47 = scmp.eq.s32.totalorder %s17, 3
      %p48 = por %p46, %p47
      %p49 = scmp.ne.s32.totalorder %s41, %s44
      %p50 = scmp.eq.s32.totalorder %s17, 0
      %p51 = por %p49, %p50
      %p52 = scmp.ne.s32.totalorder %s41, %s44
      %p53 = scmp.eq.s32.totalorder %s22, 3
      %p54 = por %p52, %p53
      %p55 = scmp.ne.s32.totalorder %s44, %s45
      %p56 = scmp.eq.s32.totalorder %s22, 0
      %p57 = por %p55, %p56
      %p58 = scmp.ne.s32.totalorder %s44, %s45
      %p59 = scmp.eq.s32.totalorder %s23, 3
      %p60 = por %p58, %p59
      %p62 = scmp.ne.s32.totalorder %s45, %s61
      %p63 = scmp.eq.s32.totalorder %s23, 0
      %p64 = por %p62, %p63
      %s66 = sadd.s32 %s65, 1
      %p69 = scmp.eq.s32.totalorder %s17, 3
      %p70 = scmp.ne.s32.totalorder %s65, %s67
      %p71 = scmp.eq.s32.totalorder %s17, 0
      %p72 = por %p70, %p71
      %p73 = scmp.ne.s32.totalorder %s65, %s67
      %p74 = scmp.eq.s32.totalorder %s22, 3
      %p75 = por %p73, %p74
      %p76 = scmp.ne.s32.totalorder %s67, %s68
      %p77 = scmp.eq.s32.totalorder %s22, 0
      %p78 = por %p76, %p77
      %p79 = scmp.ne.s32.totalorder %s67, %s68
      %p80 = scmp.eq.s32.totalorder %s23, 3
      %p81 = por %p79, %p80
      %p83 = scmp.ne.s32.totalorder %s68, %s82
      %p84 = scmp.eq.s32.totalorder %s23, 0
      %p85 = por %p83, %p84
      %s87 = sadd.s32 %s86, 1
      %p90 = scmp.eq.s32.totalorder %s17, 3
      %p91 = scmp.ne.s32.totalorder %s86, %s88
      %p92 = scmp.eq.s32.totalorder %s17, 0
      %p93 = por %p91, %p92
      %p94 = scmp.ne.s32.totalorder %s86, %s88
      %p95 = scmp.eq.s32.totalorder %s22, 3
      %p96 = por %p94, %p95
      %p97 = scmp.ne.s32.totalorder %s88, %s89
      %p98 = scmp.eq.s32.totalorder %s22, 0
      %p99 = por %p97, %p98
      %p100 = scmp.ne.s32.totalorder %s88, %s89
      %p101 = scmp.eq.s32.totalorder %s23, 3
      %p102 = por %p100, %p101
      %p104 = scmp.ne.s32.totalorder %s89, %s103
      %p105 = scmp.eq.s32.totalorder %s23, 0
      %p106 = por %p104, %p105
      %s108 = sadd.s32 %s107, 1
      %p111 = scmp.eq.s32.totalorder %s17, 3
      %p112 = scmp.ne.s32.totalorder %s107, %s109
      %p113 = scmp.eq.s32.totalorder %s17, 0
      %p114 = por %p112, %p113
      %p115 = scmp.ne.s32.totalorder %s107, %s109
      %p116 = scmp.eq.s32.totalorder %s22, 3
      %p117 = por %p115, %p116
      %p118 = scmp.ne.s32.totalorder %s109, %s110
      %p119 = scmp.eq.s32.totalorder %s22, 0
      %p120 = por %p118, %p119
      %p121 = scmp.ne.s32.totalorder %s109, %s110
      %p122 = scmp.eq.s32.totalorder %s23, 3
      %p123 = por %p121, %p122
      %p125 = scmp.ne.s32.totalorder %s110, %s124
      %p126 = scmp.eq.s32.totalorder %s23, 0
      %p127 = por %p125, %p126
      %s128 = ssub.s32 %s24, %s36
      %s129 = ssub.s32 %s25, %s32
      %s130 = sor.u32 %s128, %s129
      %p131 = scmp.eq.s32.totalorder %s130, 0
      %s133 = sadd.s32 %s132, 1
      %s134 = scalar_select %p131, %s132, %s133
      %p137 = pneg %p131
      %p138 = scmp.eq.s32.totalorder %s17, 3
      %p139 = por %p137, %p138
      %p140 = scmp.ne.s32.totalorder %s132, %s135
      %p141 = scmp.eq.s32.totalorder %s17, 0
      %p142 = por %p140, %p141
      %p143 = scmp.ne.s32.totalorder %s132, %s135
      %p144 = scmp.eq.s32.totalorder %s22, 3
      %p145 = por %p143, %p144
      %p146 = scmp.ne.s32.totalorder %s135, %s136
      %p147 = scmp.eq.s32.totalorder %s22, 0
      %p148 = por %p146, %p147
      %p149 = scmp.ne.s32.totalorder %s135, %s136
      %p150 = scmp.eq.s32.totalorder %s23, 3
      %p151 = por %p149, %p150
      %p153 = scmp.ne.s32.totalorder %s136, %s152
      %p154 = scmp.eq.s32.totalorder %s23, 0
      %p155 = por %p153, %p154
      %s156 = ssub.s32 %s24, %s36
      %s157 = ssub.s32 %s25, %s32
      %s158 = sor.u32 %s156, %s157
      %p159 = scmp.eq.s32.totalorder %s158, 0
      %s161 = sadd.s32 %s160, 1
      %s162 = scalar_select %p159, %s160, %s161
      %p165 = pneg %p159
      %p166 = scmp.eq.s32.totalorder %s17, 3
      %p167 = por %p165, %p166
      %p168 = scmp.ne.s32.totalorder %s160, %s163
      %p169 = scmp.eq.s32.totalorder %s17, 0
      %p170 = por %p168, %p169
      %p171 = scmp.ne.s32.totalorder %s160, %s163
      %p172 = scmp.eq.s32.totalorder %s22, 3
      %p173 = por %p171, %p172
      %p174 = scmp.ne.s32.totalorder %s163, %s164
      %p175 = scmp.eq.s32.totalorder %s22, 0
      %p176 = por %p174, %p175
      %p177 = scmp.ne.s32.totalorder %s163, %s164
      %p178 = scmp.eq.s32.totalorder %s23, 3
      %p179 = por %p177, %p178
      %p181 = scmp.ne.s32.totalorder %s164, %s180
      %p182 = scmp.eq.s32.totalorder %s23, 0
      %p183 = por %p181, %p182
      %s184 = ssub.s32 %s24, %s36
      %s185 = ssub.s32 %s25, %s32
      %s186 = sor.u32 %s184, %s185
      %p187 = scmp.eq.s32.totalorder %s186, 0
      %s189 = sadd.s32 %s188, 1
      %s190 = scalar_select %p187, %s188, %s189
      %p193 = pneg %p187
      %p194 = scmp.eq.s32.totalorder %s17, 3
      %p195 = por %p193, %p194
      %p196 = scmp.ne.s32.totalorder %s188, %s191
      %p197 = scmp.eq.s32.totalorder %s17, 0
      %p198 = por %p196, %p197
      %p199 = scmp.ne.s32.totalorder %s188, %s191
      %p200 = scmp.eq.s32.totalorder %s22, 3
      %p201 = por %p199, %p200
      %p202 = scmp.ne.s32.totalorder %s191, %s192
      %p203 = scmp.eq.s32.totalorder %s22, 0
      %p204 = por %p202, %p203
      %p205 = scmp.ne.s32.totalorder %s191, %s192
      %p206 = scmp.eq.s32.totalorder %s23, 3
      %p207 = por %p205, %p206
      %p209 = scmp.ne.s32.totalorder %s192, %s208
      %p210 = scmp.eq.s32.totalorder %s23, 0
      %p211 = por %p209, %p210
      %p212 = scmp.le.s32.totalorder 1, %s17
      %p213 = scmp.lt.s32.totalorder %s17, 5
      %p214 = pnand %p212, %p213
      %p215 = pneg %p214
      // Predicated region
      $region9: #{tpu_custom_call.1} parent=5 // pred_check
        _
      $region10: #{tpu_custom_call.1} parent=5 // pred_check_branch
        %217 = sbr.rel (%p214) target = $region12
      $region11: #{tpu_custom_call.1} parent=5 // pred_region
        %s218 = ssub.s32 %s17, 1
        // Predicated region
        $region13: #{tpu_custom_call.1} parent=11 // pred_check
          %p219 = pneg %p78
        $region14: #{tpu_custom_call.1} parent=11 // pred_check_branch
          %221 = sbr.rel (%p219) target = $region16
        $region15: #{tpu_custom_call.1} parent=11 // pred_region
          _
        $region16: #{tpu_custom_call.1} parent=11 // pred_fallthru
          _
        // Predicated region
        $region17: #{tpu_custom_call.1} parent=11 // pred_check
          %p222 = pneg %p99
        $region18: #{tpu_custom_call.1} parent=11 // pred_check_branch
          %224 = sbr.rel (%p222) target = $region20
        $region19: #{tpu_custom_call.1} parent=11 // pred_region
          %s226 = ssub.s32 3072, 3072
          %227 = vsyncadd [#allocation5], %s226
          %s228 = sshll.u32 [#allocation4], 4
          %s229 = int_to_ptr.vmem [resolvable:$true] %s228
          %234 = dma.hbm_to_vmem [thread:$0]  %s2, 3072, %s229, [#allocation5], 192, 192, 12
        $region20: #{tpu_custom_call.1} parent=11 // pred_fallthru
          _
        // Predicated region
        $region21: #{tpu_custom_call.1} parent=11 // pred_check
          %p235 = pneg %p120
        $region22: #{tpu_custom_call.1} parent=11 // pred_check_branch
          %237 = sbr.rel (%p235) target = $region24
        $region23: #{tpu_custom_call.1} parent=11 // pred_region
          _
        $region24: #{tpu_custom_call.1} parent=11 // pred_fallthru
          _
      $region12: #{tpu_custom_call.1} parent=5 // pred_fallthru
        _
      %p238 = scmp.lt.s32.totalorder %s17, 4
      // Predicated region
      $region25: #{tpu_custom_call.1} parent=5 // pred_check
        %p239 = pneg %p238
      $region26: #{tpu_custom_call.1} parent=5 // pred_check_branch
        %241 = sbr.rel (%p239) target = $region28
      $region27: #{tpu_custom_call.1} parent=5 // pred_region
        // Predicated region
        $region29: #{tpu_custom_call.1} parent=27 // pred_check
          %p242 = pneg %p51
        $region30: #{tpu_custom_call.1} parent=27 // pred_check_branch
          %244 = sbr.rel (%p242) target = $region32
        $region31: #{tpu_custom_call.1} parent=27 // pred_region
          %s245 = sand.u32 %s41, 1
          %s246 = scalar_lea.sflag [#allocation3], %s245
          %s247 = sand.u32 %s41, 1
          %s248 = smul.addr %s247, 32
          %s249 = scalar_lea.vmem [#allocation2], %s248
          %s250 = smul.u32 4, %s25
          %s252 = ssub.s32 512, 512
          %253 = vsyncadd %s246, %s252
          %s254 = smul.addr %s24, 8
          %s255 = sadd.s32 %s250, %s254
          %s256 = smul.addr %s255, 128
          %s257 = scalar_lea.hbm %s0, %s256
          %s258 = sshll.u32 %s249, 4
          %s259 = int_to_ptr.vmem [resolvable:$true] %s258
          %264 = dma.hbm_to_vmem [thread:$0]  %s257, 512, %s259, %s246, 128, 128, 8
        $region32: #{tpu_custom_call.1} parent=27 // pred_fallthru
          _
      $region28: #{tpu_custom_call.1} parent=5 // pred_fallthru
        _
      %p265 = scmp.le.s32.totalorder 1, %s17
      %p266 = scmp.lt.s32.totalorder %s17, 5
      %p267 = pnand %p265, %p266
      %p268 = pneg %p267
      // Predicated region
      $region33: #{tpu_custom_call.1} parent=5 // pred_check
        _
      $region34: #{tpu_custom_call.1} parent=5 // pred_check_branch
        %270 = sbr.rel (%p267) target = $region36
      $region35: #{tpu_custom_call.1} parent=5 // pred_region
        %s271 = ssub.s32 %s17, 1
        %s272 = sand.u32 %s44, 1
        %s273 = scalar_lea.sflag [#allocation3], %s272
        %s274 = sand.u32 %s44, 1
        %s275 = smul.addr %s274, 32
        %s276 = scalar_lea.vmem [#allocation2], %s275
        // Predicated region
        $region37: #{tpu_custom_call.1} parent=35 // pred_check
          %p277 = pneg %p57
        $region38: #{tpu_custom_call.1} parent=35 // pred_check_branch
          %279 = sbr.rel (%p277) target = $region40
        $region39: #{tpu_custom_call.1} parent=35 // pred_region
          %280 = dma.done %s273, 512
        $region40: #{tpu_custom_call.1} parent=35 // pred_fallthru
          _
        // Predicated region
        $region41: #{tpu_custom_call.1} parent=35 // pred_check
          %p281 = pneg %p99
        $region42: #{tpu_custom_call.1} parent=35 // pred_check_branch
          %283 = sbr.rel (%p281) target = $region44
        $region43: #{tpu_custom_call.1} parent=35 // pred_region
          %284 = dma.done [#allocation5], 3072
        $region44: #{tpu_custom_call.1} parent=35 // pred_fallthru
          _
        %s285 = sand.u32 %s44, 1
        %s286 = scalar_lea.sflag [#allocation3], %s285
        %s287 = sand.u32 %s44, 1
        %s288 = smul.addr %s287, 32
        %s289 = scalar_lea.vmem [#allocation2], %s288
        %p290 = pneg %p57
        %p291 = pneg %p54
        %p292 = pneg %p78
        %p293 = pneg %p75
        %p294 = pneg %p99
        %p295 = pneg %p96
        %p296 = pneg %p120
        %p297 = pneg %p117
        %p298 = pneg %p148
        %p299 = pneg %p145
        %s300 = sand.u32 %s135, 1
        %s301 = sand.u32 %s135, 1
        %s302 = smul.addr %s301, 64
        %s303 = scalar_lea.vmem [#allocation6], %s302
        %p304 = pneg %p176
        %p305 = pneg %p173
        %s306 = sand.u32 %s163, 1
        %s307 = sand.u32 %s163, 1
        %s308 = smul.addr %s307, 64
        %s309 = scalar_lea.vmem [#allocation7], %s308
        %p310 = pneg %p204
        %p311 = pneg %p201
        %s312 = sand.u32 %s191, 1
        %s313 = sand.u32 %s191, 1
        %s314 = smul.addr %s313, 64
        %s315 = scalar_lea.vmem [#allocation8], %s314
        %s316 = smul.u32 4, %s27
        %s317 = smul.u32 4, %s27
        %s318 = smul.u32 4, %s27
        %s319 = smul.u32 4, %s27
        %v321 = vld [vmem:[%s276] sm:$0xff]
        %v322 = vld [vmem:[%s276 + $0x8] sm:$0xff]
        %v323 = vld [vmem:[%s276 + $0x10] sm:$0xff]
        %v324 = vld [vmem:[%s276 + $0x18] sm:$0xff]
        %v325 = vld [vmem:[%s1] sm:$0x1]
        %v326 = vmul.f32 %v321, %v321
        %v327 = vmul.f32 %v322, %v322
        %v328 = vmul.f32 %v323, %v323
        %v329 = vmul.f32 %v324, %v324
        %330 = vadd.xlane.f32.xlu0 %v326
        %v331 = vpop.xlane.xlu0 %330
        %332 = vadd.xlane.f32.xlu0 %v327
        %v333 = vpop.xlane.xlu0 %332
        %334 = vadd.xlane.f32.xlu0 %v328
        %v335 = vpop.xlane.xlu0 %334
        %336 = vadd.xlane.f32.xlu0 %v329
        %v337 = vpop.xlane.xlu0 %336
        %v338 = vrcp.pop 128.0
        %v339 = vmul.f32 %v331, %v338
        %v340 = vmul.f32 %v333, %v338
        %v341 = vmul.f32 %v335, %v338
        %v342 = vmul.f32 %v337, %v338
        %v343 = vadd.f32 %v339, 1e-12
        %v344 = vadd.f32 %v340, 1e-12
        %v345 = vadd.f32 %v341, 1e-12
        %v346 = vadd.f32 %v342, 1e-12
        %v347 = vrsqrt.pop %v343
        %v348 = vrsqrt.pop %v344
        %v349 = vrsqrt.pop %v345
        %v350 = vrsqrt.pop %v346
        %v351 = vmul.f32 %v321, %v347
        %v352 = vmul.f32 %v322, %v348
        %v353 = vmul.f32 %v323, %v349
        %v354 = vmul.f32 %v324, %v350
        %v356 = vlaneseq
        %v357 = vshrl.u32 %v356, 7
        %v358 = vsub.s32 0, %v357
        %v359 = vrot.slane %v325, %v358
        %v361 = vmul.f32 %v351, %v359
        %v362 = vmul.f32 %v352, %v359
        %v363 = vmul.f32 %v353, %v359
        %v364 = vmul.f32 %v354, %v359
        %v365 = vpack.c.bf16 %v362, %v361
        %v366 = vpack.c.bf16 %v364, %v363
        %v367 = vld [vmem:[#allocation4] sm:$0xff]
        %v368 = vld [vmem:[#allocation4 + $0x8] sm:$0xf]
        %v369 = vld [vmem:[#allocation4 + $0xc] sm:$0xff]
        %v370 = vld [vmem:[#allocation4 + $0x14] sm:$0xf]
        %v371 = vld [vmem:[#allocation4 + $0x18] sm:$0xff]
        %v372 = vld [vmem:[#allocation4 + $0x20] sm:$0xf]
        %v373 = vld [vmem:[#allocation4 + $0x24] sm:$0xff]
        %v374 = vld [vmem:[#allocation4 + $0x2c] sm:$0xf]
        %v375 = vld [vmem:[#allocation4 + $0x30] sm:$0xff]
        %v376 = vld [vmem:[#allocation4 + $0x38] sm:$0xf]
        %v377 = vld [vmem:[#allocation4 + $0x3c] sm:$0xff]
        %v378 = vld [vmem:[#allocation4 + $0x44] sm:$0xf]
        %v379 = vld [vmem:[#allocation4 + $0x48] sm:$0xff]
        %v380 = vld [vmem:[#allocation4 + $0x50] sm:$0xf]
        %v381 = vld [vmem:[#allocation4 + $0x54] sm:$0xff]
        %v382 = vld [vmem:[#allocation4 + $0x5c] sm:$0xf]
        %v383 = vld [vmem:[#allocation4 + $0x60] sm:$0xff]
        %v384 = vld [vmem:[#allocation4 + $0x68] sm:$0xf]
        %v385 = vld [vmem:[#allocation4 + $0x6c] sm:$0xff]
        %v386 = vld [vmem:[#allocation4 + $0x74] sm:$0xf]
        %v387 = vld [vmem:[#allocation4 + $0x78] sm:$0xff]
        %v388 = vld [vmem:[#allocation4 + $0x80] sm:$0xf]
        %v389 = vld [vmem:[#allocation4 + $0x84] sm:$0xff]
        %v390 = vld [vmem:[#allocation4 + $0x8c] sm:$0xf]
        %v391 = vld [vmem:[#allocation4 + $0x90] sm:$0xff]
        %v392 = vld [vmem:[#allocation4 + $0x98] sm:$0xf]
        %v393 = vld [vmem:[#allocation4 + $0x9c] sm:$0xff]
        %v394 = vld [vmem:[#allocation4 + $0xa4] sm:$0xf]
        %v395 = vld [vmem:[#allocation4 + $0xa8] sm:$0xff]
        %v396 = vld [vmem:[#allocation4 + $0xb0] sm:$0xf]
        %v397 = vld [vmem:[#allocation4 + $0xb4] sm:$0xff]
        %v398 = vld [vmem:[#allocation4 + $0xbc] sm:$0xf]
        %v399 = vld [vmem:[%s3] sm:$0x7]
        %v401 = vlaneseq
        %v402 = vshrl.u32 %v401, 7
        %v403 = vsub.s32 0, %v402
        %v404 = vrot.slane %v399, %v403
        %v405 = vlaneseq
        %v406 = vshrl.u32 %v405, 7
        %v407 = vsub.s32 1, %v406
        %v408 = vrot.slane %v399, %v407
        %v409 = vlaneseq
        %v410 = vshrl.u32 %v409, 7
        %v411 = vsub.s32 2, %v410
        %v412 = vrot.slane %v399, %v411
        %v448 = vunpack.c.l.b16 %v367
        %v449 = vunpack.c.h.b16 %v367
        %v450 = vunpack.c.l.b16 %v368
        %v451 = vunpack.c.l.b16 %v369
        %v452 = vunpack.c.h.b16 %v369
        %v453 = vunpack.c.l.b16 %v370
        %v454 = vunpack.c.l.b16 %v371
        %v455 = vunpack.c.h.b16 %v371
        %v456 = vunpack.c.l.b16 %v372
        %v457 = vunpack.c.l.b16 %v373
        %v458 = vunpack.c.h.b16 %v373
        %v459 = vunpack.c.l.b16 %v374
        %v460 = vunpack.c.l.b16 %v375
        %v461 = vunpack.c.h.b16 %v375
        %v462 = vunpack.c.l.b16 %v376
        %v463 = vunpack.c.l.b16 %v377
        %v464 = vunpack.c.h.b16 %v377
        %v465 = vunpack.c.l.b16 %v378
        %v466 = vunpack.c.l.b16 %v379
        %v467 = vunpack.c.h.b16 %v379
        %v468 = vunpack.c.l.b16 %v380
        %v469 = vunpack.c.l.b16 %v381
        %v470 = vunpack.c.h.b16 %v381
        %v471 = vunpack.c.l.b16 %v382
        %v472 = vunpack.c.l.b16 %v383
        %v473 = vunpack.c.h.b16 %v383
        %v474 = vunpack.c.l.b16 %v384
        %v475 = vunpack.c.l.b16 %v385
        %v476 = vunpack.c.h.b16 %v385
        %v477 = vunpack.c.l.b16 %v386
        %v478 = vunpack.c.l.b16 %v387
        %v479 = vunpack.c.h.b16 %v387
        %v480 = vunpack.c.l.b16 %v388
        %v481 = vunpack.c.l.b16 %v389
        %v482 = vunpack.c.h.b16 %v389
        %v483 = vunpack.c.l.b16 %v390
        %v484 = vunpack.c.l.b16 %v391
        %v485 = vunpack.c.h.b16 %v391
        %v486 = vunpack.c.l.b16 %v392
        %v487 = vunpack.c.l.b16 %v393
        %v488 = vunpack.c.h.b16 %v393
        %v489 = vunpack.c.l.b16 %v394
        %v490 = vunpack.c.l.b16 %v395
        %v491 = vunpack.c.h.b16 %v395
        %v492 = vunpack.c.l.b16 %v396
        %v493 = vunpack.c.l.b16 %v397
        %v494 = vunpack.c.h.b16 %v397
        %v495 = vunpack.c.l.b16 %v398
        %v496 = vpack.c.b16 %v451, %v448
        %v497 = vpack.c.b16 %v452, %v449
        %v498 = vpack.c.b16 %v453, %v450
        %v499 = vpack.c.b16 %v457, %v454
        %v500 = vpack.c.b16 %v458, %v455
        %v501 = vpack.c.b16 %v459, %v456
        %v502 = vpack.c.b16 %v463, %v460
        %v503 = vpack.c.b16 %v464, %v461
        %v504 = vpack.c.b16 %v465, %v462
        %v505 = vpack.c.b16 %v469, %v466
        %v506 = vpack.c.b16 %v470, %v467
        %v507 = vpack.c.b16 %v471, %v468
        %v508 = vpack.c.b16 %v475, %v472
        %v509 = vpack.c.b16 %v476, %v473
        %v510 = vpack.c.b16 %v477, %v474
        %v511 = vpack.c.b16 %v481, %v478
        %v512 = vpack.c.b16 %v482, %v479
        %v513 = vpack.c.b16 %v483, %v480
        %v514 = vpack.c.b16 %v487, %v484
        %v515 = vpack.c.b16 %v488, %v485
        %v516 = vpack.c.b16 %v489, %v486
        %v517 = vpack.c.b16 %v493, %v490
        %v518 = vpack.c.b16 %v494, %v491
        %v519 = vpack.c.b16 %v495, %v492
        %544 = vmatprep.subr.bf16.mxu0 %v518
        %545 = vmatpush1.bf16.msra.mxu0 %v517
        %546 = vmatprep.subr.bf16.mxu0 %v515
        %547 = vmatpush1.bf16.msra.mxu0 %v514
        %548 = vmatprep.subr.bf16.mxu0 %v512
        %549 = vmatpush1.bf16.msra.mxu0 %v511
        %550 = vmatprep.subr.bf16.mxu0 %v509
        %551 = vmatpush1.bf16.msra.mxu0 %v508
        %552 = vmatprep.subr.bf16.mxu0 %v506
        %553 = vmatpush1.bf16.msra.mxu0 %v505
        %554 = vmatprep.subr.bf16.mxu0 %v503
        %555 = vmatpush1.bf16.msra.mxu0 %v502
        %556 = vmatprep.subr.bf16.mxu0 %v500
        %557 = vmatpush1.bf16.msra.mxu0 %v499
        %558 = vmatprep.subr.bf16.mxu0 %v497
        %559 = vmatpush1.bf16.msra.mxu0 %v496
        %560 = vmatprep.subr.bf16.mxu0 0
        %561 = vmatpush2.bf16.msra.mxu0 0
        %562 = vmatprep.subr.bf16.mxu0 0
        %563 = vmatpush2.bf16.msra.mxu0 0
        %564 = vmatprep.subr.bf16.mxu0 0
        %565 = vmatpush2.bf16.msra.mxu0 0
        %566 = vmatprep.subr.bf16.mxu0 0
        %567 = vmatpush2.bf16.msra.mxu0 0
        %568 = vmatprep.subr.bf16.mxu0 0
        %569 = vmatpush2.bf16.msra.mxu0 0
        %570 = vmatprep.subr.bf16.mxu0 0
        %571 = vmatpush2.bf16.msra.mxu0 0
        %572 = vmatprep.subr.bf16.mxu0 0
        %573 = vmatpush2.bf16.msra.mxu0 0
        %574 = vmatprep.subr.bf16.mxu0 0
        %575 = vmatpush2.bf16.msra.mxu0 0
        %576 = vmatprep.mubr.bf16.mxu0 0
        %577 = vmatmul.mubr.bf16.gmra.mxu0 %v365
        %v578 = vpop.f32.mrf.mxu0
        %v579 = vadd.f32 %v404, %v578
        %v580 = vpop.f32.mrf.mxu0
        %v581 = vadd.f32 %v408, %v580
        %v582 = vpop.f32.mrf.mxu0
        %v583 = vadd.f32 %v404, %v582
        %v584 = vpop.f32.mrf.mxu0
        %v585 = vadd.f32 %v408, %v584
        %586 = vmatprep.mubr.bf16.mxu0 0
        %587 = vmatmul.mubr.bf16.gmra.mxu0 %v366
        %v588 = vpop.f32.mrf.mxu0
        %v589 = vadd.f32 %v404, %v588
        %v590 = vpop.f32.mrf.mxu0
        %v591 = vadd.f32 %v408, %v590
        %v592 = vpop.f32.mrf.mxu0
        %v593 = vadd.f32 %v404, %v592
        %v594 = vpop.f32.mrf.mxu0
        %v595 = vadd.f32 %v408, %v594
        %596 = vdwg.mxu0
        %597 = vmatprep.subr.bf16.mxu0 0
        %598 = vmatpush1.bf16.msra.mxu0 %v519
        %599 = vmatprep.subr.bf16.mxu0 0
        %600 = vmatpush1.bf16.msra.mxu0 %v516
        %601 = vmatprep.subr.bf16.mxu0 0
        %602 = vmatpush1.bf16.msra.mxu0 %v513
        %603 = vmatprep.subr.bf16.mxu0 0
        %604 = vmatpush1.bf16.msra.mxu0 %v510
        %605 = vmatprep.subr.bf16.mxu0 0
        %606 = vmatpush1.bf16.msra.mxu0 %v507
        %607 = vmatprep.subr.bf16.mxu0 0
        %608 = vmatpush1.bf16.msra.mxu0 %v504
        %609 = vmatprep.subr.bf16.mxu0 0
        %610 = vmatpush1.bf16.msra.mxu0 %v501
        %611 = vmatprep.subr.bf16.mxu0 0
        %612 = vmatpush1.bf16.msra.mxu0 %v498
        %613 = vmatprep.subr.bf16.mxu0 0
        %614 = vmatpush2.bf16.msra.mxu0 0
        %615 = vmatprep.subr.bf16.mxu0 0
        %616 = vmatpush2.bf16.msra.mxu0 0
        %617 = vmatprep.subr.bf16.mxu0 0
        %618 = vmatpush2.bf16.msra.mxu0 0
        %619 = vmatprep.subr.bf16.mxu0 0
        %620 = vmatpush2.bf16.msra.mxu0 0
        %621 = vmatprep.subr.bf16.mxu0 0
        %622 = vmatpush2.bf16.msra.mxu0 0
        %623 = vmatprep.subr.bf16.mxu0 0
        %624 = vmatpush2.bf16.msra.mxu0 0
        %625 = vmatprep.subr.bf16.mxu0 0
        %626 = vmatpush2.bf16.msra.mxu0 0
        %627 = vmatprep.subr.bf16.mxu0 0
        %628 = vmatpush2.bf16.msra.mxu0 0
        %629 = vmatprep.mubr.bf16.mxu0 0
        %630 = vmatmul.mubr.bf16.gmra.mxu0 %v365
        %v631 = vpop.f32.mrf.mxu0
        %v632 = vadd.f32 %v412, %v631
        %v633 = vpop.f32.mrf.mxu0
        %v634 = vpop.f32.mrf.mxu0
        %v635 = vadd.f32 %v412, %v634
        %v636 = vpop.f32.mrf.mxu0
        %637 = vmatprep.mubr.bf16.mxu0 0
        %638 = vmatmul.mubr.bf16.gmra.mxu0 %v366
        %v639 = vpop.f32.mrf.mxu0
        %v640 = vadd.f32 %v412, %v639
        %v641 = vpop.f32.mrf.mxu0
        %v642 = vpop.f32.mrf.mxu0
        %v643 = vadd.f32 %v412, %v642
        %v644 = vpop.f32.mrf.mxu0
        %645 = vdwg.mxu0
        %v646 = vpack.c.bf16 %v583, %v579
        %v647 = vpack.c.bf16 %v585, %v581
        %v648 = vpack.c.bf16 %v635, %v632
        %v649 = vpack.c.bf16 %v593, %v589
        %v650 = vpack.c.bf16 %v595, %v591
        %v651 = vpack.c.bf16 %v643, %v640
        %654 = vrot.lane.b32.xlu0 %v646, 96
        %v655 = vpop.permute.xlu0 %654
        %656 = vrot.lane.b32.xlu0 %v649, 96
        %v657 = vpop.permute.xlu0 %656
        %658 = vrot.lane.b32.xlu0 %v646, 64
        %v659 = vpop.permute.xlu0 %658
        %660 = vrot.lane.b32.xlu0 %v649, 64
        %v661 = vpop.permute.xlu0 %660
        %662 = vrot.lane.b32.xlu0 %v646, 32
        %v663 = vpop.permute.xlu0 %662
        %664 = vrot.lane.b32.xlu0 %v649, 32
        %v665 = vpop.permute.xlu0 %664
        %668 = vrot.lane.b32.xlu0 %v647, 96
        %v669 = vpop.permute.xlu0 %668
        %670 = vrot.lane.b32.xlu0 %v650, 96
        %v671 = vpop.permute.xlu0 %670
        %672 = vrot.lane.b32.xlu0 %v647, 64
        %v673 = vpop.permute.xlu0 %672
        %674 = vrot.lane.b32.xlu0 %v650, 64
        %v675 = vpop.permute.xlu0 %674
        %676 = vrot.lane.b32.xlu0 %v647, 32
        %v677 = vpop.permute.xlu0 %676
        %678 = vrot.lane.b32.xlu0 %v650, 32
        %v679 = vpop.permute.xlu0 %678
        %682 = vrot.lane.b32.xlu0 %v648, 96
        %v683 = vpop.permute.xlu0 %682
        %684 = vrot.lane.b32.xlu0 %v651, 96
        %v685 = vpop.permute.xlu0 %684
        %686 = vrot.lane.b32.xlu0 %v648, 64
        %v687 = vpop.permute.xlu0 %686
        %688 = vrot.lane.b32.xlu0 %v651, 64
        %v689 = vpop.permute.xlu0 %688
        %690 = vrot.lane.b32.xlu0 %v648, 32
        %v691 = vpop.permute.xlu0 %690
        %692 = vrot.lane.b32.xlu0 %v651, 32
        %v693 = vpop.permute.xlu0 %692
        %v696 = vpack.i.b16 %v655, %v646
        %v698 = vshrl.u32 %v646, 16
        %v699 = vshrl.u32 %v655, 16
        %v700 = vpack.i.b16 %v699, %v698
        %v704 = vpack.i.b16 %v663, %v659
        %v706 = vshrl.u32 %v659, 16
        %v707 = vshrl.u32 %v663, 16
        %v708 = vpack.i.b16 %v707, %v706
        %v712 = vpack.i.b16 %v669, %v647
        %v714 = vshrl.u32 %v647, 16
        %v715 = vshrl.u32 %v669, 16
        %v716 = vpack.i.b16 %v715, %v714
        %v720 = vpack.i.b16 %v677, %v673
        %v722 = vshrl.u32 %v673, 16
        %v723 = vshrl.u32 %v677, 16
        %v724 = vpack.i.b16 %v723, %v722
        %v728 = vpack.i.b16 %v683, %v648
        %v730 = vshrl.u32 %v648, 16
        %v731 = vshrl.u32 %v683, 16
        %v732 = vpack.i.b16 %v731, %v730
        %v736 = vpack.i.b16 %v691, %v687
        %v738 = vshrl.u32 %v687, 16
        %v739 = vshrl.u32 %v691, 16
        %v740 = vpack.i.b16 %v739, %v738
        %v743 = vpack.i.b16 0, 0
        %v745 = vshrl.u32 0, 16
        %v746 = vpack.i.b16 %v745, %v745
        %v750 = vpack.i.b16 %v657, %v649
        %v752 = vshrl.u32 %v649, 16
        %v753 = vshrl.u32 %v657, 16
        %v754 = vpack.i.b16 %v753, %v752
        %v758 = vpack.i.b16 %v665, %v661
        %v760 = vshrl.u32 %v661, 16
        %v761 = vshrl.u32 %v665, 16
        %v762 = vpack.i.b16 %v761, %v760
        %v766 = vpack.i.b16 %v671, %v650
        %v768 = vshrl.u32 %v650, 16
        %v769 = vshrl.u32 %v671, 16
        %v770 = vpack.i.b16 %v769, %v768
        %v774 = vpack.i.b16 %v679, %v675
        %v776 = vshrl.u32 %v675, 16
        %v777 = vshrl.u32 %v679, 16
        %v778 = vpack.i.b16 %v777, %v776
        %v782 = vpack.i.b16 %v685, %v651
        %v784 = vshrl.u32 %v651, 16
        %v785 = vshrl.u32 %v685, 16
        %v786 = vpack.i.b16 %v785, %v784
        %v790 = vpack.i.b16 %v693, %v689
        %v792 = vshrl.u32 %v689, 16
        %v793 = vshrl.u32 %v693, 16
        %v794 = vpack.i.b16 %v793, %v792
        %v796 = vcombine.low %v696, %v712
        %v797 = vcombine.high %v696, %v712
        %v799 = vunpack.c.l.s4 1983009808
        %v800 = vunpack.c.0.s8 %v799
        %v801 = vlaneseq
        %v802 = vshrl.u32 %v801, 7
        %v803 = vsub.s32 %v800, %v802
        %v804 = vrot.slane %v796, %v803
        %v806 = vunpack.c.l.s4 1983009808
        %v807 = vunpack.c.0.s8 %v806
        %v808 = vlaneseq
        %v809 = vshrl.u32 %v808, 7
        %v810 = vsub.s32 %v807, %v809
        %v811 = vrot.slane %v797, %v810
        %v812 = vcombine.low %v704, %v720
        %v813 = vcombine.high %v704, %v720
        %v815 = vunpack.c.l.s4 1983009808
        %v816 = vunpack.c.0.s8 %v815
        %v817 = vlaneseq
        %v818 = vshrl.u32 %v817, 7
        %v819 = vsub.s32 %v816, %v818
        %v820 = vrot.slane %v812, %v819
        %v822 = vunpack.c.l.s4 1983009808
        %v823 = vunpack.c.0.s8 %v822
        %v824 = vlaneseq
        %v825 = vshrl.u32 %v824, 7
        %v826 = vsub.s32 %v823, %v825
        %v827 = vrot.slane %v813, %v826
        %v828 = vcombine.high %v728, %v743
        %v830 = vunpack.c.l.s4 1983009808
        %v831 = vunpack.c.0.s8 %v830
        %v832 = vlaneseq
        %v833 = vshrl.u32 %v832, 7
        %v834 = vsub.s32 %v831, %v833
        %v835 = vrot.slane %v728, %v834
        %v837 = vunpack.c.l.s4 1983009808
        %v838 = vunpack.c.0.s8 %v837
        %v839 = vlaneseq
        %v840 = vshrl.u32 %v839, 7
        %v841 = vsub.s32 %v838, %v840
        %v842 = vrot.slane %v828, %v841
        %v843 = vcombine.high %v736, %v743
        %v845 = vunpack.c.l.s4 1983009808
        %v846 = vunpack.c.0.s8 %v845
        %v847 = vlaneseq
        %v848 = vshrl.u32 %v847, 7
        %v849 = vsub.s32 %v846, %v848
        %v850 = vrot.slane %v736, %v849
        %v852 = vunpack.c.l.s4 1983009808
        %v853 = vunpack.c.0.s8 %v852
        %v854 = vlaneseq
        %v855 = vshrl.u32 %v854, 7
        %v856 = vsub.s32 %v853, %v855
        %v857 = vrot.slane %v843, %v856
        %v858 = vcombine.low %v804, %v820
        %v859 = vcombine.high %v804, %v820
        %v861 = vunpack.c.l.s4 1934713408
        %v862 = vunpack.c.0.s8 %v861
        %v863 = vlaneseq
        %v864 = vshrl.u32 %v863, 7
        %v865 = vsub.s32 %v862, %v864
        %v866 = vrot.slane %v858, %v865
        %v868 = vunpack.c.l.s4 1934713408
        %v869 = vunpack.c.0.s8 %v868
        %v870 = vlaneseq
        %v871 = vshrl.u32 %v870, 7
        %v872 = vsub.s32 %v869, %v871
        %v873 = vrot.slane %v859, %v872
        %v874 = vcombine.low %v811, %v827
        %v875 = vcombine.high %v811, %v827
        %v877 = vunpack.c.l.s4 1934713408
        %v878 = vunpack.c.0.s8 %v877
        %v879 = vlaneseq
        %v880 = vshrl.u32 %v879, 7
        %v881 = vsub.s32 %v878, %v880
        %v882 = vrot.slane %v874, %v881
        %v884 = vunpack.c.l.s4 1934713408
        %v885 = vunpack.c.0.s8 %v884
        %v886 = vlaneseq
        %v887 = vshrl.u32 %v886, 7
        %v888 = vsub.s32 %v885, %v887
        %v889 = vrot.slane %v875, %v888
        %v890 = vcombine.low %v835, %v850
        %v891 = vcombine.high %v835, %v850
        %v893 = vunpack.c.l.s4 1934713408
        %v894 = vunpack.c.0.s8 %v893
        %v895 = vlaneseq
        %v896 = vshrl.u32 %v895, 7
        %v897 = vsub.s32 %v894, %v896
        %v898 = vrot.slane %v890, %v897
        %v900 = vunpack.c.l.s4 1934713408
        %v901 = vunpack.c.0.s8 %v900
        %v902 = vlaneseq
        %v903 = vshrl.u32 %v902, 7
        %v904 = vsub.s32 %v901, %v903
        %v905 = vrot.slane %v891, %v904
        %v906 = vcombine.low %v842, %v857
        %v907 = vcombine.high %v842, %v857
        %v909 = vunpack.c.l.s4 1934713408
        %v910 = vunpack.c.0.s8 %v909
        %v911 = vlaneseq
        %v912 = vshrl.u32 %v911, 7
        %v913 = vsub.s32 %v910, %v912
        %v914 = vrot.slane %v906, %v913
        %v916 = vunpack.c.l.s4 1934713408
        %v917 = vunpack.c.0.s8 %v916
        %v918 = vlaneseq
        %v919 = vshrl.u32 %v918, 7
        %v920 = vsub.s32 %v917, %v919
        %v921 = vrot.slane %v907, %v920
        %v922 = vcombine.low %v866, %v898
        %v923 = vcombine.high %v866, %v898
        %v924 = vcombine.low %v873, %v905
        %v925 = vcombine.high %v873, %v905
        %v926 = vcombine.low %v882, %v914
        %v927 = vcombine.high %v882, %v914
        %v928 = vcombine.low %v889, %v921
        %v929 = vcombine.high %v889, %v921
        %v930 = vcombine.low %v700, %v716
        %v931 = vcombine.high %v700, %v716
        %v933 = vunpack.c.l.s4 1983009808
        %v934 = vunpack.c.0.s8 %v933
        %v935 = vlaneseq
        %v936 = vshrl.u32 %v935, 7
        %v937 = vsub.s32 %v934, %v936
        %v938 = vrot.slane %v930, %v937
        %v940 = vunpack.c.l.s4 1983009808
        %v941 = vunpack.c.0.s8 %v940
        %v942 = vlaneseq
        %v943 = vshrl.u32 %v942, 7
        %v944 = vsub.s32 %v941, %v943
        %v945 = vrot.slane %v931, %v944
        %v946 = vcombine.low %v708, %v724
        %v947 = vcombine.high %v708, %v724
        %v949 = vunpack.c.l.s4 1983009808
        %v950 = vunpack.c.0.s8 %v949
        %v951 = vlaneseq
        %v952 = vshrl.u32 %v951, 7
        %v953 = vsub.s32 %v950, %v952
        %v954 = vrot.slane %v946, %v953
        %v956 = vunpack.c.l.s4 1983009808
        %v957 = vunpack.c.0.s8 %v956
        %v958 = vlaneseq
        %v959 = vshrl.u32 %v958, 7
        %v960 = vsub.s32 %v957, %v959
        %v961 = vrot.slane %v947, %v960
        %v962 = vcombine.high %v732, %v746
        %v964 = vunpack.c.l.s4 1983009808
        %v965 = vunpack.c.0.s8 %v964
        %v966 = vlaneseq
        %v967 = vshrl.u32 %v966, 7
        %v968 = vsub.s32 %v965, %v967
        %v969 = vrot.slane %v732, %v968
        %v971 = vunpack.c.l.s4 1983009808
        %v972 = vunpack.c.0.s8 %v971
        %v973 = vlaneseq
        %v974 = vshrl.u32 %v973, 7
        %v975 = vsub.s32 %v972, %v974
        %v976 = vrot.slane %v962, %v975
        %v977 = vcombine.high %v740, %v746
        %v979 = vunpack.c.l.s4 1983009808
        %v980 = vunpack.c.0.s8 %v979
        %v981 = vlaneseq
        %v982 = vshrl.u32 %v981, 7
        %v983 = vsub.s32 %v980, %v982
        %v984 = vrot.slane %v740, %v983
        %v986 = vunpack.c.l.s4 1983009808
        %v987 = vunpack.c.0.s8 %v986
        %v988 = vlaneseq
        %v989 = vshrl.u32 %v988, 7
        %v990 = vsub.s32 %v987, %v989
        %v991 = vrot.slane %v977, %v990
        %v992 = vcombine.low %v938, %v954
        %v993 = vcombine.high %v938, %v954
        %v995 = vunpack.c.l.s4 1934713408
        %v996 = vunpack.c.0.s8 %v995
        %v997 = vlaneseq
        %v998 = vshrl.u32 %v997, 7
        %v999 = vsub.s32 %v996, %v998
        %v1000 = vrot.slane %v992, %v999
        %v1002 = vunpack.c.l.s4 1934713408
        %v1003 = vunpack.c.0.s8 %v1002
        %v1004 = vlaneseq
        %v1005 = vshrl.u32 %v1004, 7
        %v1006 = vsub.s32 %v1003, %v1005
        %v1007 = vrot.slane %v993, %v1006
        %v1008 = vcombine.low %v945, %v961
        %v1009 = vcombine.high %v945, %v961
        %v1011 = vunpack.c.l.s4 1934713408
        %v1012 = vunpack.c.0.s8 %v1011
        %v1013 = vlaneseq
        %v1014 = vshrl.u32 %v1013, 7
        %v1015 = vsub.s32 %v1012, %v1014
        %v1016 = vrot.slane %v1008, %v1015
        %v1018 = vunpack.c.l.s4 1934713408
        %v1019 = vunpack.c.0.s8 %v1018
        %v1020 = vlaneseq
        %v1021 = vshrl.u32 %v1020, 7
        %v1022 = vsub.s32 %v1019, %v1021
        %v1023 = vrot.slane %v1009, %v1022
        %v1024 = vcombine.low %v969, %v984
        %v1025 = vcombine.high %v969, %v984
        %v1027 = vunpack.c.l.s4 1934713408
        %v1028 = vunpack.c.0.s8 %v1027
        %v1029 = vlaneseq
        %v1030 = vshrl.u32 %v1029, 7
        %v1031 = vsub.s32 %v1028, %v1030
        %v1032 = vrot.slane %v1024, %v1031
        %v1034 = vunpack.c.l.s4 1934713408
        %v1035 = vunpack.c.0.s8 %v1034
        %v1036 = vlaneseq
        %v1037 = vshrl.u32 %v1036, 7
        %v1038 = vsub.s32 %v1035, %v1037
        %v1039 = vrot.slane %v1025, %v1038
        %v1040 = vcombine.low %v976, %v991
        %v1041 = vcombine.high %v976, %v991
        %v1043 = vunpack.c.l.s4 1934713408
        %v1044 = vunpack.c.0.s8 %v1043
        %v1045 = vlaneseq
        %v1046 = vshrl.u32 %v1045, 7
        %v1047 = vsub.s32 %v1044, %v1046
        %v1048 = vrot.slane %v1040, %v1047
        %v1050 = vunpack.c.l.s4 1934713408
        %v1051 = vunpack.c.0.s8 %v1050
        %v1052 = vlaneseq
        %v1053 = vshrl.u32 %v1052, 7
        %v1054 = vsub.s32 %v1051, %v1053
        %v1055 = vrot.slane %v1041, %v1054
        %v1056 = vcombine.low %v1000, %v1032
        %v1057 = vcombine.high %v1000, %v1032
        %v1058 = vcombine.low %v1007, %v1039
        %v1059 = vcombine.high %v1007, %v1039
        %v1060 = vcombine.low %v1016, %v1048
        %v1061 = vcombine.high %v1016, %v1048
        %v1062 = vcombine.low %v1023, %v1055
        %v1063 = vcombine.high %v1023, %v1055
        %v1064 = vcombine.low %v750, %v766
        %v1065 = vcombine.high %v750, %v766
        %v1067 = vunpack.c.l.s4 1983009808
        %v1068 = vunpack.c.0.s8 %v1067
        %v1069 = vlaneseq
        %v1070 = vshrl.u32 %v1069, 7
        %v1071 = vsub.s32 %v1068, %v1070
        %v1072 = vrot.slane %v1064, %v1071
        %v1074 = vunpack.c.l.s4 1983009808
        %v1075 = vunpack.c.0.s8 %v1074
        %v1076 = vlaneseq
        %v1077 = vshrl.u32 %v1076, 7
        %v1078 = vsub.s32 %v1075, %v1077
        %v1079 = vrot.slane %v1065, %v1078
        %v1080 = vcombine.low %v758, %v774
        %v1081 = vcombine.high %v758, %v774
        %v1083 = vunpack.c.l.s4 1983009808
        %v1084 = vunpack.c.0.s8 %v1083
        %v1085 = vlaneseq
        %v1086 = vshrl.u32 %v1085, 7
        %v1087 = vsub.s32 %v1084, %v1086
        %v1088 = vrot.slane %v1080, %v1087
        %v1090 = vunpack.c.l.s4 1983009808
        %v1091 = vunpack.c.0.s8 %v1090
        %v1092 = vlaneseq
        %v1093 = vshrl.u32 %v1092, 7
        %v1094 = vsub.s32 %v1091, %v1093
        %v1095 = vrot.slane %v1081, %v1094
        %v1096 = vcombine.high %v782, %v743
        %v1098 = vunpack.c.l.s4 1983009808
        %v1099 = vunpack.c.0.s8 %v1098
        %v1100 = vlaneseq
        %v1101 = vshrl.u32 %v1100, 7
        %v1102 = vsub.s32 %v1099, %v1101
        %v1103 = vrot.slane %v782, %v1102
        %v1105 = vunpack.c.l.s4 1983009808
        %v1106 = vunpack.c.0.s8 %v1105
        %v1107 = vlaneseq
        %v1108 = vshrl.u32 %v1107, 7
        %v1109 = vsub.s32 %v1106, %v1108
        %v1110 = vrot.slane %v1096, %v1109
        %v1111 = vcombine.high %v790, %v743
        %v1113 = vunpack.c.l.s4 1983009808
        %v1114 = vunpack.c.0.s8 %v1113
        %v1115 = vlaneseq
        %v1116 = vshrl.u32 %v1115, 7
        %v1117 = vsub.s32 %v1114, %v1116
        %v1118 = vrot.slane %v790, %v1117
        %v1120 = vunpack.c.l.s4 1983009808
        %v1121 = vunpack.c.0.s8 %v1120
        %v1122 = vlaneseq
        %v1123 = vshrl.u32 %v1122, 7
        %v1124 = vsub.s32 %v1121, %v1123
        %v1125 = vrot.slane %v1111, %v1124
        %v1126 = vcombine.low %v1072, %v1088
        %v1127 = vcombine.high %v1072, %v1088
        %v1129 = vunpack.c.l.s4 1934713408
        %v1130 = vunpack.c.0.s8 %v1129
        %v1131 = vlaneseq
        %v1132 = vshrl.u32 %v1131, 7
        %v1133 = vsub.s32 %v1130, %v1132
        %v1134 = vrot.slane %v1126, %v1133
        %v1136 = vunpack.c.l.s4 1934713408
        %v1137 = vunpack.c.0.s8 %v1136
        %v1138 = vlaneseq
        %v1139 = vshrl.u32 %v1138, 7
        %v1140 = vsub.s32 %v1137, %v1139
        %v1141 = vrot.slane %v1127, %v1140
        %v1142 = vcombine.low %v1079, %v1095
        %v1143 = vcombine.high %v1079, %v1095
        %v1145 = vunpack.c.l.s4 1934713408
        %v1146 = vunpack.c.0.s8 %v1145
        %v1147 = vlaneseq
        %v1148 = vshrl.u32 %v1147, 7
        %v1149 = vsub.s32 %v1146, %v1148
        %v1150 = vrot.slane %v1142, %v1149
        %v1152 = vunpack.c.l.s4 1934713408
        %v1153 = vunpack.c.0.s8 %v1152
        %v1154 = vlaneseq
        %v1155 = vshrl.u32 %v1154, 7
        %v1156 = vsub.s32 %v1153, %v1155
        %v1157 = vrot.slane %v1143, %v1156
        %v1158 = vcombine.low %v1103, %v1118
        %v1159 = vcombine.high %v1103, %v1118
        %v1161 = vunpack.c.l.s4 1934713408
        %v1162 = vunpack.c.0.s8 %v1161
        %v1163 = vlaneseq
        %v1164 = vshrl.u32 %v1163, 7
        %v1165 = vsub.s32 %v1162, %v1164
        %v1166 = vrot.slane %v1158, %v1165
        %v1168 = vunpack.c.l.s4 1934713408
        %v1169 = vunpack.c.0.s8 %v1168
        %v1170 = vlaneseq
        %v1171 = vshrl.u32 %v1170, 7
        %v1172 = vsub.s32 %v1169, %v1171
        %v1173 = vrot.slane %v1159, %v1172
        %v1174 = vcombine.low %v1110, %v1125
        %v1175 = vcombine.high %v1110, %v1125
        %v1177 = vunpack.c.l.s4 1934713408
        %v1178 = vunpack.c.0.s8 %v1177
        %v1179 = vlaneseq
        %v1180 = vshrl.u32 %v1179, 7
        %v1181 = vsub.s32 %v1178, %v1180
        %v1182 = vrot.slane %v1174, %v1181
        %v1184 = vunpack.c.l.s4 1934713408
        %v1185 = vunpack.c.0.s8 %v1184
        %v1186 = vlaneseq
        %v1187 = vshrl.u32 %v1186, 7
        %v1188 = vsub.s32 %v1185, %v1187
        %v1189 = vrot.slane %v1175, %v1188
        %v1190 = vcombine.low %v1134, %v1166
        %v1191 = vcombine.high %v1134, %v1166
        %v1192 = vcombine.low %v1141, %v1173
        %v1193 = vcombine.high %v1141, %v1173
        %v1194 = vcombine.low %v1150, %v1182
        %v1195 = vcombine.high %v1150, %v1182
        %v1196 = vcombine.low %v1157, %v1189
        %v1197 = vcombine.high %v1157, %v1189
        %v1198 = vcombine.low %v754, %v770
        %v1199 = vcombine.high %v754, %v770
        %v1201 = vunpack.c.l.s4 1983009808
        %v1202 = vunpack.c.0.s8 %v1201
        %v1203 = vlaneseq
        %v1204 = vshrl.u32 %v1203, 7
        %v1205 = vsub.s32 %v1202, %v1204
        %v1206 = vrot.slane %v1198, %v1205
        %v1208 = vunpack.c.l.s4 1983009808
        %v1209 = vunpack.c.0.s8 %v1208
        %v1210 = vlaneseq
        %v1211 = vshrl.u32 %v1210, 7
        %v1212 = vsub.s32 %v1209, %v1211
        %v1213 = vrot.slane %v1199, %v1212
        %v1214 = vcombine.low %v762, %v778
        %v1215 = vcombine.high %v762, %v778
        %v1217 = vunpack.c.l.s4 1983009808
        %v1218 = vunpack.c.0.s8 %v1217
        %v1219 = vlaneseq
        %v1220 = vshrl.u32 %v1219, 7
        %v1221 = vsub.s32 %v1218, %v1220
        %v1222 = vrot.slane %v1214, %v1221
        %v1224 = vunpack.c.l.s4 1983009808
        %v1225 = vunpack.c.0.s8 %v1224
        %v1226 = vlaneseq
        %v1227 = vshrl.u32 %v1226, 7
        %v1228 = vsub.s32 %v1225, %v1227
        %v1229 = vrot.slane %v1215, %v1228
        %v1230 = vcombine.high %v786, %v746
        %v1232 = vunpack.c.l.s4 1983009808
        %v1233 = vunpack.c.0.s8 %v1232
        %v1234 = vlaneseq
        %v1235 = vshrl.u32 %v1234, 7
        %v1236 = vsub.s32 %v1233, %v1235
        %v1237 = vrot.slane %v786, %v1236
        %v1239 = vunpack.c.l.s4 1983009808
        %v1240 = vunpack.c.0.s8 %v1239
        %v1241 = vlaneseq
        %v1242 = vshrl.u32 %v1241, 7
        %v1243 = vsub.s32 %v1240, %v1242
        %v1244 = vrot.slane %v1230, %v1243
        %v1245 = vcombine.high %v794, %v746
        %v1247 = vunpack.c.l.s4 1983009808
        %v1248 = vunpack.c.0.s8 %v1247
        %v1249 = vlaneseq
        %v1250 = vshrl.u32 %v1249, 7
        %v1251 = vsub.s32 %v1248, %v1250
        %v1252 = vrot.slane %v794, %v1251
        %v1254 = vunpack.c.l.s4 1983009808
        %v1255 = vunpack.c.0.s8 %v1254
        %v1256 = vlaneseq
        %v1257 = vshrl.u32 %v1256, 7
        %v1258 = vsub.s32 %v1255, %v1257
        %v1259 = vrot.slane %v1245, %v1258
        %v1260 = vcombine.low %v1206, %v1222
        %v1261 = vcombine.high %v1206, %v1222
        %v1263 = vunpack.c.l.s4 1934713408
        %v1264 = vunpack.c.0.s8 %v1263
        %v1265 = vlaneseq
        %v1266 = vshrl.u32 %v1265, 7
        %v1267 = vsub.s32 %v1264, %v1266
        %v1268 = vrot.slane %v1260, %v1267
        %v1270 = vunpack.c.l.s4 1934713408
        %v1271 = vunpack.c.0.s8 %v1270
        %v1272 = vlaneseq
        %v1273 = vshrl.u32 %v1272, 7
        %v1274 = vsub.s32 %v1271, %v1273
        %v1275 = vrot.slane %v1261, %v1274
        %v1276 = vcombine.low %v1213, %v1229
        %v1277 = vcombine.high %v1213, %v1229
        %v1279 = vunpack.c.l.s4 1934713408
        %v1280 = vunpack.c.0.s8 %v1279
        %v1281 = vlaneseq
        %v1282 = vshrl.u32 %v1281, 7
        %v1283 = vsub.s32 %v1280, %v1282
        %v1284 = vrot.slane %v1276, %v1283
        %v1286 = vunpack.c.l.s4 1934713408
        %v1287 = vunpack.c.0.s8 %v1286
        %v1288 = vlaneseq
        %v1289 = vshrl.u32 %v1288, 7
        %v1290 = vsub.s32 %v1287, %v1289
        %v1291 = vrot.slane %v1277, %v1290
        %v1292 = vcombine.low %v1237, %v1252
        %v1293 = vcombine.high %v1237, %v1252
        %v1295 = vunpack.c.l.s4 1934713408
        %v1296 = vunpack.c.0.s8 %v1295
        %v1297 = vlaneseq
        %v1298 = vshrl.u32 %v1297, 7
        %v1299 = vsub.s32 %v1296, %v1298
        %v1300 = vrot.slane %v1292, %v1299
        %v1302 = vunpack.c.l.s4 1934713408
        %v1303 = vunpack.c.0.s8 %v1302
        %v1304 = vlaneseq
        %v1305 = vshrl.u32 %v1304, 7
        %v1306 = vsub.s32 %v1303, %v1305
        %v1307 = vrot.slane %v1293, %v1306
        %v1308 = vcombine.low %v1244, %v1259
        %v1309 = vcombine.high %v1244, %v1259
        %v1311 = vunpack.c.l.s4 1934713408
        %v1312 = vunpack.c.0.s8 %v1311
        %v1313 = vlaneseq
        %v1314 = vshrl.u32 %v1313, 7
        %v1315 = vsub.s32 %v1312, %v1314
        %v1316 = vrot.slane %v1308, %v1315
        %v1318 = vunpack.c.l.s4 1934713408
        %v1319 = vunpack.c.0.s8 %v1318
        %v1320 = vlaneseq
        %v1321 = vshrl.u32 %v1320, 7
        %v1322 = vsub.s32 %v1319, %v1321
        %v1323 = vrot.slane %v1309, %v1322
        %v1324 = vcombine.low %v1268, %v1300
        %v1325 = vcombine.high %v1268, %v1300
        %v1326 = vcombine.low %v1275, %v1307
        %v1327 = vcombine.high %v1275, %v1307
        %v1328 = vcombine.low %v1284, %v1316
        %v1329 = vcombine.high %v1284, %v1316
        %v1330 = vcombine.low %v1291, %v1323
        %v1331 = vcombine.high %v1291, %v1323
        %v1332 = vcombine.low %v922, %v924
        %v1333 = vcombine.high %v922, %v924
        %v1335 = vunpack.c.l.s4 1983009808
        %v1336 = vunpack.c.0.s8 %v1335
        %v1337 = vlaneseq
        %v1338 = vshrl.u32 %v1337, 7
        %v1339 = vsub.s32 %v1336, %v1338
        %v1340 = vrot.slane %v1332, %v1339
        %v1342 = vunpack.c.l.s4 1983009808
        %v1343 = vunpack.c.0.s8 %v1342
        %v1344 = vlaneseq
        %v1345 = vshrl.u32 %v1344, 7
        %v1346 = vsub.s32 %v1343, %v1345
        %v1347 = vrot.slane %v1333, %v1346
        %v1348 = vcombine.low %v923, %v925
        %v1349 = vcombine.high %v923, %v925
        %v1351 = vunpack.c.l.s4 1983009808
        %v1352 = vunpack.c.0.s8 %v1351
        %v1353 = vlaneseq
        %v1354 = vshrl.u32 %v1353, 7
        %v1355 = vsub.s32 %v1352, %v1354
        %v1356 = vrot.slane %v1348, %v1355
        %v1358 = vunpack.c.l.s4 1983009808
        %v1359 = vunpack.c.0.s8 %v1358
        %v1360 = vlaneseq
        %v1361 = vshrl.u32 %v1360, 7
        %v1362 = vsub.s32 %v1359, %v1361
        %v1363 = vrot.slane %v1349, %v1362
        %v1364 = vcombine.low %v926, %v928
        %v1365 = vcombine.high %v926, %v928
        %v1367 = vunpack.c.l.s4 1983009808
        %v1368 = vunpack.c.0.s8 %v1367
        %v1369 = vlaneseq
        %v1370 = vshrl.u32 %v1369, 7
        %v1371 = vsub.s32 %v1368, %v1370
        %v1372 = vrot.slane %v1364, %v1371
        %v1374 = vunpack.c.l.s4 1983009808
        %v1375 = vunpack.c.0.s8 %v1374
        %v1376 = vlaneseq
        %v1377 = vshrl.u32 %v1376, 7
        %v1378 = vsub.s32 %v1375, %v1377
        %v1379 = vrot.slane %v1365, %v1378
        %v1380 = vcombine.low %v927, %v929
        %v1381 = vcombine.high %v927, %v929
        %v1383 = vunpack.c.l.s4 1983009808
        %v1384 = vunpack.c.0.s8 %v1383
        %v1385 = vlaneseq
        %v1386 = vshrl.u32 %v1385, 7
        %v1387 = vsub.s32 %v1384, %v1386
        %v1388 = vrot.slane %v1380, %v1387
        %v1390 = vunpack.c.l.s4 1983009808
        %v1391 = vunpack.c.0.s8 %v1390
        %v1392 = vlaneseq
        %v1393 = vshrl.u32 %v1392, 7
        %v1394 = vsub.s32 %v1391, %v1393
        %v1395 = vrot.slane %v1381, %v1394
        %v1396 = vcombine.low %v1340, %v1356
        %v1397 = vcombine.high %v1340, %v1356
        %v1399 = vunpack.c.l.s4 1934713408
        %v1400 = vunpack.c.0.s8 %v1399
        %v1401 = vlaneseq
        %v1402 = vshrl.u32 %v1401, 7
        %v1403 = vsub.s32 %v1400, %v1402
        %v1404 = vrot.slane %v1396, %v1403
        %v1406 = vunpack.c.l.s4 1934713408
        %v1407 = vunpack.c.0.s8 %v1406
        %v1408 = vlaneseq
        %v1409 = vshrl.u32 %v1408, 7
        %v1410 = vsub.s32 %v1407, %v1409
        %v1411 = vrot.slane %v1397, %v1410
        %v1412 = vcombine.low %v1347, %v1363
        %v1414 = vunpack.c.l.s4 1934713408
        %v1415 = vunpack.c.0.s8 %v1414
        %v1416 = vlaneseq
        %v1417 = vshrl.u32 %v1416, 7
        %v1418 = vsub.s32 %v1415, %v1417
        %v1419 = vrot.slane %v1412, %v1418
        %v1420 = vcombine.low %v1372, %v1388
        %v1421 = vcombine.high %v1372, %v1388
        %v1423 = vunpack.c.l.s4 1934713408
        %v1424 = vunpack.c.0.s8 %v1423
        %v1425 = vlaneseq
        %v1426 = vshrl.u32 %v1425, 7
        %v1427 = vsub.s32 %v1424, %v1426
        %v1428 = vrot.slane %v1420, %v1427
        %v1430 = vunpack.c.l.s4 1934713408
        %v1431 = vunpack.c.0.s8 %v1430
        %v1432 = vlaneseq
        %v1433 = vshrl.u32 %v1432, 7
        %v1434 = vsub.s32 %v1431, %v1433
        %v1435 = vrot.slane %v1421, %v1434
        %v1436 = vcombine.low %v1379, %v1395
        %v1438 = vunpack.c.l.s4 1934713408
        %v1439 = vunpack.c.0.s8 %v1438
        %v1440 = vlaneseq
        %v1441 = vshrl.u32 %v1440, 7
        %v1442 = vsub.s32 %v1439, %v1441
        %v1443 = vrot.slane %v1436, %v1442
        %v1444 = vcombine.low %v1404, %v1428
        %v1445 = vcombine.high %v1404, %v1428
        %v1446 = vcombine.low %v1411, %v1435
        %v1447 = vcombine.high %v1411, %v1435
        %v1448 = vcombine.low %v1419, %v1443
        %v1449 = vcombine.high %v1419, %v1443
        %v1450 = vcombine.low %v1056, %v1058
        %v1451 = vcombine.high %v1056, %v1058
        %v1453 = vunpack.c.l.s4 1983009808
        %v1454 = vunpack.c.0.s8 %v1453
        %v1455 = vlaneseq
        %v1456 = vshrl.u32 %v1455, 7
        %v1457 = vsub.s32 %v1454, %v1456
        %v1458 = vrot.slane %v1450, %v1457
        %v1460 = vunpack.c.l.s4 1983009808
        %v1461 = vunpack.c.0.s8 %v1460
        %v1462 = vlaneseq
        %v1463 = vshrl.u32 %v1462, 7
        %v1464 = vsub.s32 %v1461, %v1463
        %v1465 = vrot.slane %v1451, %v1464
        %v1466 = vcombine.low %v1057, %v1059
        %v1467 = vcombine.high %v1057, %v1059
        %v1469 = vunpack.c.l.s4 1983009808
        %v1470 = vunpack.c.0.s8 %v1469
        %v1471 = vlaneseq
        %v1472 = vshrl.u32 %v1471, 7
        %v1473 = vsub.s32 %v1470, %v1472
        %v1474 = vrot.slane %v1466, %v1473
        %v1476 = vunpack.c.l.s4 1983009808
        %v1477 = vunpack.c.0.s8 %v1476
        %v1478 = vlaneseq
        %v1479 = vshrl.u32 %v1478, 7
        %v1480 = vsub.s32 %v1477, %v1479
        %v1481 = vrot.slane %v1467, %v1480
        %v1482 = vcombine.low %v1060, %v1062
        %v1483 = vcombine.high %v1060, %v1062
        %v1485 = vunpack.c.l.s4 1983009808
        %v1486 = vunpack.c.0.s8 %v1485
        %v1487 = vlaneseq
        %v1488 = vshrl.u32 %v1487, 7
        %v1489 = vsub.s32 %v1486, %v1488
        %v1490 = vrot.slane %v1482, %v1489
        %v1492 = vunpack.c.l.s4 1983009808
        %v1493 = vunpack.c.0.s8 %v1492
        %v1494 = vlaneseq
        %v1495 = vshrl.u32 %v1494, 7
        %v1496 = vsub.s32 %v1493, %v1495
        %v1497 = vrot.slane %v1483, %v1496
        %v1498 = vcombine.low %v1061, %v1063
        %v1499 = vcombine.high %v1061, %v1063
        %v1501 = vunpack.c.l.s4 1983009808
        %v1502 = vunpack.c.0.s8 %v1501
        %v1503 = vlaneseq
        %v1504 = vshrl.u32 %v1503, 7
        %v1505 = vsub.s32 %v1502, %v1504
        %v1506 = vrot.slane %v1498, %v1505
        %v1508 = vunpack.c.l.s4 1983009808
        %v1509 = vunpack.c.0.s8 %v1508
        %v1510 = vlaneseq
        %v1511 = vshrl.u32 %v1510, 7
        %v1512 = vsub.s32 %v1509, %v1511
        %v1513 = vrot.slane %v1499, %v1512
        %v1514 = vcombine.low %v1458, %v1474
        %v1515 = vcombine.high %v1458, %v1474
        %v1517 = vunpack.c.l.s4 1934713408
        %v1518 = vunpack.c.0.s8 %v1517
        %v1519 = vlaneseq
        %v1520 = vshrl.u32 %v1519, 7
        %v1521 = vsub.s32 %v1518, %v1520
        %v1522 = vrot.slane %v1514, %v1521
        %v1524 = vunpack.c.l.s4 1934713408
        %v1525 = vunpack.c.0.s8 %v1524
        %v1526 = vlaneseq
        %v1527 = vshrl.u32 %v1526, 7
        %v1528 = vsub.s32 %v1525, %v1527
        %v1529 = vrot.slane %v1515, %v1528
        %v1530 = vcombine.low %v1465, %v1481
        %v1532 = vunpack.c.l.s4 1934713408
        %v1533 = vunpack.c.0.s8 %v1532
        %v1534 = vlaneseq
        %v1535 = vshrl.u32 %v1534, 7
        %v1536 = vsub.s32 %v1533, %v1535
        %v1537 = vrot.slane %v1530, %v1536
        %v1538 = vcombine.low %v1490, %v1506
        %v1539 = vcombine.high %v1490, %v1506
        %v1541 = vunpack.c.l.s4 1934713408
        %v1542 = vunpack.c.0.s8 %v1541
        %v1543 = vlaneseq
        %v1544 = vshrl.u32 %v1543, 7
        %v1545 = vsub.s32 %v1542, %v1544
        %v1546 = vrot.slane %v1538, %v1545
        %v1548 = vunpack.c.l.s4 1934713408
        %v1549 = vunpack.c.0.s8 %v1548
        %v1550 = vlaneseq
        %v1551 = vshrl.u32 %v1550, 7
        %v1552 = vsub.s32 %v1549, %v1551
        %v1553 = vrot.slane %v1539, %v1552
        %v1554 = vcombine.low %v1497, %v1513
        %v1556 = vunpack.c.l.s4 1934713408
        %v1557 = vunpack.c.0.s8 %v1556
        %v1558 = vlaneseq
        %v1559 = vshrl.u32 %v1558, 7
        %v1560 = vsub.s32 %v1557, %v1559
        %v1561 = vrot.slane %v1554, %v1560
        %v1562 = vcombine.low %v1522, %v1546
        %v1563 = vcombine.high %v1522, %v1546
        %v1564 = vcombine.low %v1529, %v1553
        %v1565 = vcombine.high %v1529, %v1553
        %v1566 = vcombine.low %v1537, %v1561
        %v1567 = vcombine.high %v1537, %v1561
        %v1568 = vcombine.low %v1190, %v1192
        %v1569 = vcombine.high %v1190, %v1192
        %v1571 = vunpack.c.l.s4 1983009808
        %v1572 = vunpack.c.0.s8 %v1571
        %v1573 = vlaneseq
        %v1574 = vshrl.u32 %v1573, 7
        %v1575 = vsub.s32 %v1572, %v1574
        %v1576 = vrot.slane %v1568, %v1575
        %v1578 = vunpack.c.l.s4 1983009808
        %v1579 = vunpack.c.0.s8 %v1578
        %v1580 = vlaneseq
        %v1581 = vshrl.u32 %v1580, 7
        %v1582 = vsub.s32 %v1579, %v1581
        %v1583 = vrot.slane %v1569, %v1582
        %v1584 = vcombine.low %v1191, %v1193
        %v1585 = vcombine.high %v1191, %v1193
        %v1587 = vunpack.c.l.s4 1983009808
        %v1588 = vunpack.c.0.s8 %v1587
        %v1589 = vlaneseq
        %v1590 = vshrl.u32 %v1589, 7
        %v1591 = vsub.s32 %v1588, %v1590
        %v1592 = vrot.slane %v1584, %v1591
        %v1594 = vunpack.c.l.s4 1983009808
        %v1595 = vunpack.c.0.s8 %v1594
        %v1596 = vlaneseq
        %v1597 = vshrl.u32 %v1596, 7
        %v1598 = vsub.s32 %v1595, %v1597
        %v1599 = vrot.slane %v1585, %v1598
        %v1600 = vcombine.low %v1194, %v1196
        %v1601 = vcombine.high %v1194, %v1196
        %v1603 = vunpack.c.l.s4 1983009808
        %v1604 = vunpack.c.0.s8 %v1603
        %v1605 = vlaneseq
        %v1606 = vshrl.u32 %v1605, 7
        %v1607 = vsub.s32 %v1604, %v1606
        %v1608 = vrot.slane %v1600, %v1607
        %v1610 = vunpack.c.l.s4 1983009808
        %v1611 = vunpack.c.0.s8 %v1610
        %v1612 = vlaneseq
        %v1613 = vshrl.u32 %v1612, 7
        %v1614 = vsub.s32 %v1611, %v1613
        %v1615 = vrot.slane %v1601, %v1614
        %v1616 = vcombine.low %v1195, %v1197
        %v1617 = vcombine.high %v1195, %v1197
        %v1619 = vunpack.c.l.s4 1983009808
        %v1620 = vunpack.c.0.s8 %v1619
        %v1621 = vlaneseq
        %v1622 = vshrl.u32 %v1621, 7
        %v1623 = vsub.s32 %v1620, %v1622
        %v1624 = vrot.slane %v1616, %v1623
        %v1626 = vunpack.c.l.s4 1983009808
        %v1627 = vunpack.c.0.s8 %v1626
        %v1628 = vlaneseq
        %v1629 = vshrl.u32 %v1628, 7
        %v1630 = vsub.s32 %v1627, %v1629
        %v1631 = vrot.slane %v1617, %v1630
        %v1632 = vcombine.low %v1576, %v1592
        %v1633 = vcombine.high %v1576, %v1592
        %v1635 = vunpack.c.l.s4 1934713408
        %v1636 = vunpack.c.0.s8 %v1635
        %v1637 = vlaneseq
        %v1638 = vshrl.u32 %v1637, 7
        %v1639 = vsub.s32 %v1636, %v1638
        %v1640 = vrot.slane %v1632, %v1639
        %v1642 = vunpack.c.l.s4 1934713408
        %v1643 = vunpack.c.0.s8 %v1642
        %v1644 = vlaneseq
        %v1645 = vshrl.u32 %v1644, 7
        %v1646 = vsub.s32 %v1643, %v1645
        %v1647 = vrot.slane %v1633, %v1646
        %v1648 = vcombine.low %v1583, %v1599
        %v1650 = vunpack.c.l.s4 1934713408
        %v1651 = vunpack.c.0.s8 %v1650
        %v1652 = vlaneseq
        %v1653 = vshrl.u32 %v1652, 7
        %v1654 = vsub.s32 %v1651, %v1653
        %v1655 = vrot.slane %v1648, %v1654
        %v1656 = vcombine.low %v1608, %v1624
        %v1657 = vcombine.high %v1608, %v1624
        %v1659 = vunpack.c.l.s4 1934713408
        %v1660 = vunpack.c.0.s8 %v1659
        %v1661 = vlaneseq
        %v1662 = vshrl.u32 %v1661, 7
        %v1663 = vsub.s32 %v1660, %v1662
        %v1664 = vrot.slane %v1656, %v1663
        %v1666 = vunpack.c.l.s4 1934713408
        %v1667 = vunpack.c.0.s8 %v1666
        %v1668 = vlaneseq
        %v1669 = vshrl.u32 %v1668, 7
        %v1670 = vsub.s32 %v1667, %v1669
        %v1671 = vrot.slane %v1657, %v1670
        %v1672 = vcombine.low %v1615, %v1631
        %v1674 = vunpack.c.l.s4 1934713408
        %v1675 = vunpack.c.0.s8 %v1674
        %v1676 = vlaneseq
        %v1677 = vshrl.u32 %v1676, 7
        %v1678 = vsub.s32 %v1675, %v1677
        %v1679 = vrot.slane %v1672, %v1678
        %v1680 = vcombine.low %v1640, %v1664
        %v1681 = vcombine.high %v1640, %v1664
        %v1682 = vcombine.low %v1647, %v1671
        %v1683 = vcombine.high %v1647, %v1671
        %v1684 = vcombine.low %v1655, %v1679
        %v1685 = vcombine.high %v1655, %v1679
        %v1686 = vcombine.low %v1324, %v1326
        %v1687 = vcombine.high %v1324, %v1326
        %v1689 = vunpack.c.l.s4 1983009808
        %v1690 = vunpack.c.0.s8 %v1689
        %v1691 = vlaneseq
        %v1692 = vshrl.u32 %v1691, 7
        %v1693 = vsub.s32 %v1690, %v1692
        %v1694 = vrot.slane %v1686, %v1693
        %v1696 = vunpack.c.l.s4 1983009808
        %v1697 = vunpack.c.0.s8 %v1696
        %v1698 = vlaneseq
        %v1699 = vshrl.u32 %v1698, 7
        %v1700 = vsub.s32 %v1697, %v1699
        %v1701 = vrot.slane %v1687, %v1700
        %v1702 = vcombine.low %v1325, %v1327
        %v1703 = vcombine.high %v1325, %v1327
        %v1705 = vunpack.c.l.s4 1983009808
        %v1706 = vunpack.c.0.s8 %v1705
        %v1707 = vlaneseq
        %v1708 = vshrl.u32 %v1707, 7
        %v1709 = vsub.s32 %v1706, %v1708
        %v1710 = vrot.slane %v1702, %v1709
        %v1712 = vunpack.c.l.s4 1983009808
        %v1713 = vunpack.c.0.s8 %v1712
        %v1714 = vlaneseq
        %v1715 = vshrl.u32 %v1714, 7
        %v1716 = vsub.s32 %v1713, %v1715
        %v1717 = vrot.slane %v1703, %v1716
        %v1718 = vcombine.low %v1328, %v1330
        %v1719 = vcombine.high %v1328, %v1330
        %v1721 = vunpack.c.l.s4 1983009808
        %v1722 = vunpack.c.0.s8 %v1721
        %v1723 = vlaneseq
        %v1724 = vshrl.u32 %v1723, 7
        %v1725 = vsub.s32 %v1722, %v1724
        %v1726 = vrot.slane %v1718, %v1725
        %v1728 = vunpack.c.l.s4 1983009808
        %v1729 = vunpack.c.0.s8 %v1728
        %v1730 = vlaneseq
        %v1731 = vshrl.u32 %v1730, 7
        %v1732 = vsub.s32 %v1729, %v1731
        %v1733 = vrot.slane %v1719, %v1732
        %v1734 = vcombine.low %v1329, %v1331
        %v1735 = vcombine.high %v1329, %v1331
        %v1737 = vunpack.c.l.s4 1983009808
        %v1738 = vunpack.c.0.s8 %v1737
        %v1739 = vlaneseq
        %v1740 = vshrl.u32 %v1739, 7
        %v1741 = vsub.s32 %v1738, %v1740
        %v1742 = vrot.slane %v1734, %v1741
        %v1744 = vunpack.c.l.s4 1983009808
        %v1745 = vunpack.c.0.s8 %v1744
        %v1746 = vlaneseq
        %v1747 = vshrl.u32 %v1746, 7
        %v1748 = vsub.s32 %v1745, %v1747
        %v1749 = vrot.slane %v1735, %v1748
        %v1750 = vcombine.low %v1694, %v1710
        %v1751 = vcombine.high %v1694, %v1710
        %v1753 = vunpack.c.l.s4 1934713408
        %v1754 = vunpack.c.0.s8 %v1753
        %v1755 = vlaneseq
        %v1756 = vshrl.u32 %v1755, 7
        %v1757 = vsub.s32 %v1754, %v1756
        %v1758 = vrot.slane %v1750, %v1757
        %v1760 = vunpack.c.l.s4 1934713408
        %v1761 = vunpack.c.0.s8 %v1760
        %v1762 = vlaneseq
        %v1763 = vshrl.u32 %v1762, 7
        %v1764 = vsub.s32 %v1761, %v1763
        %v1765 = vrot.slane %v1751, %v1764
        %v1766 = vcombine.low %v1701, %v1717
        %v1768 = vunpack.c.l.s4 1934713408
        %v1769 = vunpack.c.0.s8 %v1768
        %v1770 = vlaneseq
        %v1771 = vshrl.u32 %v1770, 7
        %v1772 = vsub.s32 %v1769, %v1771
        %v1773 = vrot.slane %v1766, %v1772
        %v1774 = vcombine.low %v1726, %v1742
        %v1775 = vcombine.high %v1726, %v1742
        %v1777 = vunpack.c.l.s4 1934713408
        %v1778 = vunpack.c.0.s8 %v1777
        %v1779 = vlaneseq
        %v1780 = vshrl.u32 %v1779, 7
        %v1781 = vsub.s32 %v1778, %v1780
        %v1782 = vrot.slane %v1774, %v1781
        %v1784 = vunpack.c.l.s4 1934713408
        %v1785 = vunpack.c.0.s8 %v1784
        %v1786 = vlaneseq
        %v1787 = vshrl.u32 %v1786, 7
        %v1788 = vsub.s32 %v1785, %v1787
        %v1789 = vrot.slane %v1775, %v1788
        %v1790 = vcombine.low %v1733, %v1749
        %v1792 = vunpack.c.l.s4 1934713408
        %v1793 = vunpack.c.0.s8 %v1792
        %v1794 = vlaneseq
        %v1795 = vshrl.u32 %v1794, 7
        %v1796 = vsub.s32 %v1793, %v1795
        %v1797 = vrot.slane %v1790, %v1796
        %v1798 = vcombine.low %v1758, %v1782
        %v1799 = vcombine.high %v1758, %v1782
        %v1800 = vcombine.low %v1765, %v1789
        %v1801 = vcombine.high %v1765, %v1789
        %v1802 = vcombine.low %v1773, %v1797
        %v1803 = vcombine.high %v1773, %v1797
        %v1806 = vpack.i.b16 %v1562, %v1444
        %v1807 = vshrl.u32 %v1444, 16
        %v1808 = vshrl.u32 %v1562, 16
        %v1809 = vpack.i.b16 %v1808, %v1807
        %v1812 = vpack.i.b16 %v1563, %v1445
        %v1813 = vshrl.u32 %v1445, 16
        %v1814 = vshrl.u32 %v1563, 16
        %v1815 = vpack.i.b16 %v1814, %v1813
        %v1818 = vpack.i.b16 %v1564, %v1446
        %v1819 = vshrl.u32 %v1446, 16
        %v1820 = vshrl.u32 %v1564, 16
        %v1821 = vpack.i.b16 %v1820, %v1819
        %v1824 = vpack.i.b16 %v1565, %v1447
        %v1825 = vshrl.u32 %v1447, 16
        %v1826 = vshrl.u32 %v1565, 16
        %v1827 = vpack.i.b16 %v1826, %v1825
        %v1830 = vpack.i.b16 %v1566, %v1448
        %v1831 = vshrl.u32 %v1448, 16
        %v1832 = vshrl.u32 %v1566, 16
        %v1833 = vpack.i.b16 %v1832, %v1831
        %v1836 = vpack.i.b16 %v1567, %v1449
        %v1837 = vshrl.u32 %v1449, 16
        %v1838 = vshrl.u32 %v1567, 16
        %v1839 = vpack.i.b16 %v1838, %v1837
        %v1842 = vpack.i.b16 %v1798, %v1680
        %v1843 = vshrl.u32 %v1680, 16
        %v1844 = vshrl.u32 %v1798, 16
        %v1845 = vpack.i.b16 %v1844, %v1843
        %v1848 = vpack.i.b16 %v1799, %v1681
        %v1849 = vshrl.u32 %v1681, 16
        %v1850 = vshrl.u32 %v1799, 16
        %v1851 = vpack.i.b16 %v1850, %v1849
        %v1854 = vpack.i.b16 %v1800, %v1682
        %v1855 = vshrl.u32 %v1682, 16
        %v1856 = vshrl.u32 %v1800, 16
        %v1857 = vpack.i.b16 %v1856, %v1855
        %v1860 = vpack.i.b16 %v1801, %v1683
        %v1861 = vshrl.u32 %v1683, 16
        %v1862 = vshrl.u32 %v1801, 16
        %v1863 = vpack.i.b16 %v1862, %v1861
        %v1866 = vpack.i.b16 %v1802, %v1684
        %v1867 = vshrl.u32 %v1684, 16
        %v1868 = vshrl.u32 %v1802, 16
        %v1869 = vpack.i.b16 %v1868, %v1867
        %v1872 = vpack.i.b16 %v1803, %v1685
        %v1873 = vshrl.u32 %v1685, 16
        %v1874 = vshrl.u32 %v1803, 16
        %v1875 = vpack.i.b16 %v1874, %v1873
        %v1876 = vunpack.c.l.b16 %v1806
        %v1877 = vunpack.c.h.b16 %v1806
        %v1878 = vunpack.c.l.b16 %v1842
        %v1879 = vunpack.c.h.b16 %v1842
        %v1880 = vunpack.c.l.b16 %v1809
        %v1881 = vunpack.c.h.b16 %v1809
        %v1882 = vunpack.c.l.b16 %v1845
        %v1883 = vunpack.c.h.b16 %v1845
        %v1884 = vunpack.c.l.b16 %v1812
        %v1885 = vunpack.c.h.b16 %v1812
        %v1886 = vunpack.c.l.b16 %v1848
        %v1887 = vunpack.c.h.b16 %v1848
        %v1888 = vunpack.c.l.b16 %v1815
        %v1889 = vunpack.c.h.b16 %v1815
        %v1890 = vunpack.c.l.b16 %v1851
        %v1891 = vunpack.c.h.b16 %v1851
        %v1892 = vpack.c.b16 %v1876, %v1876
        %v1893 = vpack.c.b16 %v1877, %v1877
        %v1894 = vpack.c.b16 %v1878, %v1878
        %v1895 = vpack.c.b16 %v1879, %v1879
        %v1896 = vpack.c.b16 %v1880, %v1880
        %v1897 = vpack.c.b16 %v1881, %v1881
        %v1898 = vpack.c.b16 %v1882, %v1882
        %v1899 = vpack.c.b16 %v1883, %v1883
        %v1900 = vpack.c.b16 %v1884, %v1884
        %v1901 = vpack.c.b16 %v1885, %v1885
        %v1902 = vpack.c.b16 %v1886, %v1886
        %v1903 = vpack.c.b16 %v1887, %v1887
        %v1904 = vpack.c.b16 %v1888, %v1888
        %v1905 = vpack.c.b16 %v1889, %v1889
        %v1906 = vpack.c.b16 %v1890, %v1890
        %v1907 = vpack.c.b16 %v1891, %v1891
        %vm1924 = vcmask 257024
        %1925 = vst.msk [vmem:[%s303] sm:$0xf] %vm1924, %v1892
        %1926 = vst.msk [vmem:[%s303 + $0x4] sm:$0xf] %vm1924, %v1893
        %1927 = vst.msk [vmem:[%s303 + $0x8] sm:$0xf] %vm1924, %v1894
        %1928 = vst.msk [vmem:[%s303 + $0xc] sm:$0xf] %vm1924, %v1895
        %1929 = vst.msk [vmem:[%s303 + $0x10] sm:$0xf] %vm1924, %v1896
        %1930 = vst.msk [vmem:[%s303 + $0x14] sm:$0xf] %vm1924, %v1897
        %1931 = vst.msk [vmem:[%s303 + $0x18] sm:$0xf] %vm1924, %v1898
        %1932 = vst.msk [vmem:[%s303 + $0x1c] sm:$0xf] %vm1924, %v1899
        %1933 = vst.msk [vmem:[%s303 + $0x20] sm:$0xf] %vm1924, %v1900
        %1934 = vst.msk [vmem:[%s303 + $0x24] sm:$0xf] %vm1924, %v1901
        %1935 = vst.msk [vmem:[%s303 + $0x28] sm:$0xf] %vm1924, %v1902
        %1936 = vst.msk [vmem:[%s303 + $0x2c] sm:$0xf] %vm1924, %v1903
        %1937 = vst.msk [vmem:[%s303 + $0x30] sm:$0xf] %vm1924, %v1904
        %1938 = vst.msk [vmem:[%s303 + $0x34] sm:$0xf] %vm1924, %v1905
        %1939 = vst.msk [vmem:[%s303 + $0x38] sm:$0xf] %vm1924, %v1906
        %1940 = vst.msk [vmem:[%s303 + $0x3c] sm:$0xf] %vm1924, %v1907
        %v1941 = vunpack.c.l.b16 %v1818
        %v1942 = vunpack.c.h.b16 %v1818
        %v1943 = vunpack.c.l.b16 %v1854
        %v1944 = vunpack.c.h.b16 %v1854
        %v1945 = vunpack.c.l.b16 %v1821
        %v1946 = vunpack.c.h.b16 %v1821
        %v1947 = vunpack.c.l.b16 %v1857
        %v1948 = vunpack.c.h.b16 %v1857
        %v1949 = vunpack.c.l.b16 %v1824
        %v1950 = vunpack.c.h.b16 %v1824
        %v1951 = vunpack.c.l.b16 %v1860
        %v1952 = vunpack.c.h.b16 %v1860
        %v1953 = vunpack.c.l.b16 %v1827
        %v1954 = vunpack.c.h.b16 %v1827
        %v1955 = vunpack.c.l.b16 %v1863
        %v1956 = vunpack.c.h.b16 %v1863
        %v1957 = vpack.c.b16 %v1941, %v1941
        %v1958 = vpack.c.b16 %v1942, %v1942
        %v1959 = vpack.c.b16 %v1943, %v1943
        %v1960 = vpack.c.b16 %v1944, %v1944
        %v1961 = vpack.c.b16 %v1945, %v1945
        %v1962 = vpack.c.b16 %v1946, %v1946
        %v1963 = vpack.c.b16 %v1947, %v1947
        %v1964 = vpack.c.b16 %v1948, %v1948
        %v1965 = vpack.c.b16 %v1949, %v1949
        %v1966 = vpack.c.b16 %v1950, %v1950
        %v1967 = vpack.c.b16 %v1951, %v1951
        %v1968 = vpack.c.b16 %v1952, %v1952
        %v1969 = vpack.c.b16 %v1953, %v1953
        %v1970 = vpack.c.b16 %v1954, %v1954
        %v1971 = vpack.c.b16 %v1955, %v1955
        %v1972 = vpack.c.b16 %v1956, %v1956
        %1989 = vst.msk [vmem:[%s309] sm:$0xf] %vm1924, %v1957
        %1990 = vst.msk [vmem:[%s309 + $0x4] sm:$0xf] %vm1924, %v1958
        %1991 = vst.msk [vmem:[%s309 + $0x8] sm:$0xf] %vm1924, %v1959
        %1992 = vst.msk [vmem:[%s309 + $0xc] sm:$0xf] %vm1924, %v1960
        %1993 = vst.msk [vmem:[%s309 + $0x10] sm:$0xf] %vm1924, %v1961
        %1994 = vst.msk [vmem:[%s309 + $0x14] sm:$0xf] %vm1924, %v1962
        %1995 = vst.msk [vmem:[%s309 + $0x18] sm:$0xf] %vm1924, %v1963
        %1996 = vst.msk [vmem:[%s309 + $0x1c] sm:$0xf] %vm1924, %v1964
        %1997 = vst.msk [vmem:[%s309 + $0x20] sm:$0xf] %vm1924, %v1965
        %1998 = vst.msk [vmem:[%s309 + $0x24] sm:$0xf] %vm1924, %v1966
        %1999 = vst.msk [vmem:[%s309 + $0x28] sm:$0xf] %vm1924, %v1967
        %2000 = vst.msk [vmem:[%s309 + $0x2c] sm:$0xf] %vm1924, %v1968
        %2001 = vst.msk [vmem:[%s309 + $0x30] sm:$0xf] %vm1924, %v1969
        %2002 = vst.msk [vmem:[%s309 + $0x34] sm:$0xf] %vm1924, %v1970
        %2003 = vst.msk [vmem:[%s309 + $0x38] sm:$0xf] %vm1924, %v1971
        %2004 = vst.msk [vmem:[%s309 + $0x3c] sm:$0xf] %vm1924, %v1972
        %v2005 = vunpack.c.l.b16 %v1830
        %v2006 = vunpack.c.h.b16 %v1830
        %v2007 = vunpack.c.l.b16 %v1866
        %v2008 = vunpack.c.h.b16 %v1866
        %v2009 = vunpack.c.l.b16 %v1833
        %v2010 = vunpack.c.h.b16 %v1833
        %v2011 = vunpack.c.l.b16 %v1869
        %v2012 = vunpack.c.h.b16 %v1869
        %v2013 = vunpack.c.l.b16 %v1836
        %v2014 = vunpack.c.h.b16 %v1836
        %v2015 = vunpack.c.l.b16 %v1872
        %v2016 = vunpack.c.h.b16 %v1872
        %v2017 = vunpack.c.l.b16 %v1839
        %v2018 = vunpack.c.h.b16 %v1839
        %v2019 = vunpack.c.l.b16 %v1875
        %v2020 = vunpack.c.h.b16 %v1875
        %v2021 = vpack.c.b16 %v2005, %v2005
        %v2022 = vpack.c.b16 %v2006, %v2006
        %v2023 = vpack.c.b16 %v2007, %v2007
        %v2024 = vpack.c.b16 %v2008, %v2008
        %v2025 = vpack.c.b16 %v2009, %v2009
        %v2026 = vpack.c.b16 %v2010, %v2010
        %v2027 = vpack.c.b16 %v2011, %v2011
        %v2028 = vpack.c.b16 %v2012, %v2012
        %v2029 = vpack.c.b16 %v2013, %v2013
        %v2030 = vpack.c.b16 %v2014, %v2014
        %v2031 = vpack.c.b16 %v2015, %v2015
        %v2032 = vpack.c.b16 %v2016, %v2016
        %v2033 = vpack.c.b16 %v2017, %v2017
        %v2034 = vpack.c.b16 %v2018, %v2018
        %v2035 = vpack.c.b16 %v2019, %v2019
        %v2036 = vpack.c.b16 %v2020, %v2020
        %2053 = vst.msk [vmem:[%s315] sm:$0xf] %vm1924, %v2021
        %2054 = vst.msk [vmem:[%s315 + $0x4] sm:$0xf] %vm1924, %v2022
        %2055 = vst.msk [vmem:[%s315 + $0x8] sm:$0xf] %vm1924, %v2023
        %2056 = vst.msk [vmem:[%s315 + $0xc] sm:$0xf] %vm1924, %v2024
        %2057 = vst.msk [vmem:[%s315 + $0x10] sm:$0xf] %vm1924, %v2025
        %2058 = vst.msk [vmem:[%s315 + $0x14] sm:$0xf] %vm1924, %v2026
        %2059 = vst.msk [vmem:[%s315 + $0x18] sm:$0xf] %vm1924, %v2027
        %2060 = vst.msk [vmem:[%s315 + $0x1c] sm:$0xf] %vm1924, %v2028
        %2061 = vst.msk [vmem:[%s315 + $0x20] sm:$0xf] %vm1924, %v2029
        %2062 = vst.msk [vmem:[%s315 + $0x24] sm:$0xf] %vm1924, %v2030
        %2063 = vst.msk [vmem:[%s315 + $0x28] sm:$0xf] %vm1924, %v2031
        %2064 = vst.msk [vmem:[%s315 + $0x2c] sm:$0xf] %vm1924, %v2032
        %2065 = vst.msk [vmem:[%s315 + $0x30] sm:$0xf] %vm1924, %v2033
        %2066 = vst.msk [vmem:[%s315 + $0x34] sm:$0xf] %vm1924, %v2034
        %2067 = vst.msk [vmem:[%s315 + $0x38] sm:$0xf] %vm1924, %v2035
        %2068 = vst.msk [vmem:[%s315 + $0x3c] sm:$0xf] %vm1924, %v2036
        %s2069 = sand.u32 %s135, 1
        %s2070 = sand.u32 %s135, 1
        %s2071 = smul.addr %s2070, 64
        %s2072 = scalar_lea.vmem [#allocation6], %s2071
        %s2073 = sand.u32 %s163, 1
        %s2074 = sand.u32 %s163, 1
        %s2075 = smul.addr %s2074, 64
        %s2076 = scalar_lea.vmem [#allocation7], %s2075
        %s2077 = sand.u32 %s191, 1
        %s2078 = sand.u32 %s191, 1
        %s2079 = smul.addr %s2078, 64
        %s2080 = scalar_lea.vmem [#allocation8], %s2079
        // Predicated region
        $region45: #{tpu_custom_call.1} parent=35 // pred_check
          %p2081 = pneg %p145
        $region46: #{tpu_custom_call.1} parent=35 // pred_check_branch
          %2083 = sbr.rel (%p2081) target = $region48
        $region47: #{tpu_custom_call.1} parent=35 // pred_region
          %s2084 = smul.u32 4, %s27
          %s2085 = smul.addr %s26, 32
          %s2086 = sadd.s32 %s2084, %s2085
          %s2087 = smul.addr %s2086, 4
          %s2088 = scalar_lea.vmem %s4, %s2087
          // Predicated region
          $region49: #{tpu_custom_call.1} parent=47 // pred_check
            _
          $region50: #{tpu_custom_call.1} parent=47 // pred_check_branch
            %2090 = sbr.rel (0) target = $region52
          $region51: #{tpu_custom_call.1} parent=47 // pred_region
            // Predicated region
            $region53: #{tpu_custom_call.1} parent=51 // pred_check
              _
            $region54: #{tpu_custom_call.1} parent=51 // pred_check_branch
              %2092 = sbr.rel target = $region56
            $region55: #{tpu_custom_call.1} parent=51 // pred_region
              // Predicated region
              $region68: #{tpu_custom_call.1} parent=55 // pred_check
                _
              $region69: #{tpu_custom_call.1} parent=55 // pred_check_branch
                %2138 = sbr.rel (0) target = $region71
              $region70: #{tpu_custom_call.1} parent=55 // pred_region
                loop: start=0, step=1, limit=1
                $region72: #{tpu_custom_call.1} parent=70 // loop_pre_header
                  _
                $region73: #{tpu_custom_call.1} parent=70 // loop_header
                  %s2140 = sphi 0, %s2144
                  %p2141 = scmp.ge.s32.totalorder %s2140, 1
                  %s2145 = sphi %s2072, %s2072
                  %s2146 = sphi %s2088, %s2088
                $region74: #{tpu_custom_call.1} parent=70 // loop_header_branch
                  %2143 = sbr.rel (%p2141) target = $region78
                $region75: #{tpu_custom_call.1} parent=70 // loop_body
                  _
                $region76: #{tpu_custom_call.1} parent=70 // loop_footer
                  %s2144 = sadd.s32 1, %s2140
                $region77: #{tpu_custom_call.1} parent=70 // loop_footer_branch
                  %2139 = sbr.rel target = $region73
                $region78: #{tpu_custom_call.1} parent=70 // loop_exit
                  _
                %s2148 = ssub.s32 16, 1
                loop: start=0, step=1, limit=1
                $region79: #{tpu_custom_call.1} parent=70 // loop_pre_header
                  _
                $region80: #{tpu_custom_call.1} parent=70 // loop_header
                  %s2150 = sphi 0, %s2154
                  %p2151 = scmp.ge.s32.totalorder %s2150, 1
                  %s2155 = sphi %s2072, %s2072
                  %s2156 = sphi %s2088, %s2088
                $region81: #{tpu_custom_call.1} parent=70 // loop_header_branch
                  %2153 = sbr.rel (%p2151) target = $region85
                $region82: #{tpu_custom_call.1} parent=70 // loop_body
                  %v2157 = vld [vmem:[%s2155] sm:%s2148]
                  %2158 = vst [vmem:[%s2156] sm:%s2148] %v2157
                  %v2159 = vld [vmem:[%s2155 + $0x4] sm:%s2148]
                  %2160 = vst [vmem:[%s2156 + $0x4] sm:%s2148] %v2159
                  %v2161 = vld [vmem:[%s2155 + $0x8] sm:%s2148]
                  %2162 = vst [vmem:[%s2156 + $0x8] sm:%s2148] %v2161
                  %v2163 = vld [vmem:[%s2155 + $0xc] sm:%s2148]
                  %2164 = vst [vmem:[%s2156 + $0xc] sm:%s2148] %v2163
                  %v2165 = vld [vmem:[%s2155 + $0x10] sm:%s2148]
                  %2166 = vst [vmem:[%s2156 + $0x20] sm:%s2148] %v2165
                  %v2167 = vld [vmem:[%s2155 + $0x14] sm:%s2148]
                  %2168 = vst [vmem:[%s2156 + $0x24] sm:%s2148] %v2167
                  %v2169 = vld [vmem:[%s2155 + $0x18] sm:%s2148]
                  %2170 = vst [vmem:[%s2156 + $0x28] sm:%s2148] %v2169
                  %v2171 = vld [vmem:[%s2155 + $0x1c] sm:%s2148]
                  %2172 = vst [vmem:[%s2156 + $0x2c] sm:%s2148] %v2171
                  %v2173 = vld [vmem:[%s2155 + $0x20] sm:%s2148]
                  %2174 = vst [vmem:[%s2156 + $0x40] sm:%s2148] %v2173
                  %v2175 = vld [vmem:[%s2155 + $0x24] sm:%s2148]
                  %2176 = vst [vmem:[%s2156 + $0x44] sm:%s2148] %v2175
                  %v2177 = vld [vmem:[%s2155 + $0x28] sm:%s2148]
                  %2178 = vst [vmem:[%s2156 + $0x48] sm:%s2148] %v2177
                  %v2179 = vld [vmem:[%s2155 + $0x2c] sm:%s2148]
                  %2180 = vst [vmem:[%s2156 + $0x4c] sm:%s2148] %v2179
                  %v2181 = vld [vmem:[%s2155 + $0x30] sm:%s2148]
                  %2182 = vst [vmem:[%s2156 + $0x60] sm:%s2148] %v2181
                  %v2183 = vld [vmem:[%s2155 + $0x34] sm:%s2148]
                  %2184 = vst [vmem:[%s2156 + $0x64] sm:%s2148] %v2183
                  %v2185 = vld [vmem:[%s2155 + $0x38] sm:%s2148]
                  %2186 = vst [vmem:[%s2156 + $0x68] sm:%s2148] %v2185
                  %v2187 = vld [vmem:[%s2155 + $0x3c] sm:%s2148]
                  %2188 = vst [vmem:[%s2156 + $0x6c] sm:%s2148] %v2187
                $region83: #{tpu_custom_call.1} parent=70 // loop_footer
                  %s2154 = sadd.s32 1, %s2150
                $region84: #{tpu_custom_call.1} parent=70 // loop_footer_branch
                  %2149 = sbr.rel target = $region80
                $region85: #{tpu_custom_call.1} parent=70 // loop_exit
                  _
              $region71: #{tpu_custom_call.1} parent=55 // pred_fallthru
                _
            $region56: #{tpu_custom_call.1} parent=51 // pred_fallthru
              _
            // Predicated region
            $region57: #{tpu_custom_call.1} parent=51 // pred_check
              _
            $region58: #{tpu_custom_call.1} parent=51 // pred_check_branch
              %2094 = sbr.rel (0) target = $region60
            $region59: #{tpu_custom_call.1} parent=51 // pred_region
              %s2096 = ssub.s32 16, 1
              loop: start=0, step=1, limit=1
              $region61: #{tpu_custom_call.1} parent=59 // loop_pre_header
                _
              $region62: #{tpu_custom_call.1} parent=59 // loop_header
                %s2098 = sphi 0, %s2102
                %p2099 = scmp.ge.s32.totalorder %s2098, 1
                %s2103 = sphi %s2072, %s2072
                %s2104 = sphi %s2088, %s2088
              $region63: #{tpu_custom_call.1} parent=59 // loop_header_branch
                %2101 = sbr.rel (%p2099) target = $region67
              $region64: #{tpu_custom_call.1} parent=59 // loop_body
                %v2105 = vld [vmem:[%s2103] sm:%s2096]
                %2106 = vst [vmem:[%s2104] sm:%s2096] %v2105
                %v2107 = vld [vmem:[%s2103 + $0x4] sm:%s2096]
                %2108 = vst [vmem:[%s2104 + $0x4] sm:%s2096] %v2107
                %v2109 = vld [vmem:[%s2103 + $0x8] sm:%s2096]
                %2110 = vst [vmem:[%s2104 + $0x8] sm:%s2096] %v2109
                %v2111 = vld [vmem:[%s2103 + $0xc] sm:%s2096]
                %2112 = vst [vmem:[%s2104 + $0xc] sm:%s2096] %v2111
                %v2113 = vld [vmem:[%s2103 + $0x10] sm:%s2096]
                %2114 = vst [vmem:[%s2104 + $0x20] sm:%s2096] %v2113
                %v2115 = vld [vmem:[%s2103 + $0x14] sm:%s2096]
                %2116 = vst [vmem:[%s2104 + $0x24] sm:%s2096] %v2115
                %v2117 = vld [vmem:[%s2103 + $0x18] sm:%s2096]
                %2118 = vst [vmem:[%s2104 + $0x28] sm:%s2096] %v2117
                %v2119 = vld [vmem:[%s2103 + $0x1c] sm:%s2096]
                %2120 = vst [vmem:[%s2104 + $0x2c] sm:%s2096] %v2119
                %v2121 = vld [vmem:[%s2103 + $0x20] sm:%s2096]
                %2122 = vst [vmem:[%s2104 + $0x40] sm:%s2096] %v2121
                %v2123 = vld [vmem:[%s2103 + $0x24] sm:%s2096]
                %2124 = vst [vmem:[%s2104 + $0x44] sm:%s2096] %v2123
                %v2125 = vld [vmem:[%s2103 + $0x28] sm:%s2096]
                %2126 = vst [vmem:[%s2104 + $0x48] sm:%s2096] %v2125
                %v2127 = vld [vmem:[%s2103 + $0x2c] sm:%s2096]
                %2128 = vst [vmem:[%s2104 + $0x4c] sm:%s2096] %v2127
                %v2129 = vld [vmem:[%s2103 + $0x30] sm:%s2096]
                %2130 = vst [vmem:[%s2104 + $0x60] sm:%s2096] %v2129
                %v2131 = vld [vmem:[%s2103 + $0x34] sm:%s2096]
                %2132 = vst [vmem:[%s2104 + $0x64] sm:%s2096] %v2131
                %v2133 = vld [vmem:[%s2103 + $0x38] sm:%s2096]
                %2134 = vst [vmem:[%s2104 + $0x68] sm:%s2096] %v2133
                %v2135 = vld [vmem:[%s2103 + $0x3c] sm:%s2096]
                %2136 = vst [vmem:[%s2104 + $0x6c] sm:%s2096] %v2135
              $region65: #{tpu_custom_call.1} parent=59 // loop_footer
                %s2102 = sadd.s32 1, %s2098
              $region66: #{tpu_custom_call.1} parent=59 // loop_footer_branch
                %2097 = sbr.rel target = $region62
              $region67: #{tpu_custom_call.1} parent=59 // loop_exit
                _
            $region60: #{tpu_custom_call.1} parent=51 // pred_fallthru
              _
          $region52: #{tpu_custom_call.1} parent=47 // pred_fallthru
            _
          %2189 = vnop
        $region48: #{tpu_custom_call.1} parent=35 // pred_fallthru
          _
        // Predicated region
        $region86: #{tpu_custom_call.1} parent=35 // pred_check
          %p2190 = pneg %p173
        $region87: #{tpu_custom_call.1} parent=35 // pred_check_branch
          %2192 = sbr.rel (%p2190) target = $region89
        $region88: #{tpu_custom_call.1} parent=35 // pred_region
          %s2193 = smul.u32 4, %s27
          %s2194 = smul.addr %s26, 32
          %s2195 = sadd.s32 %s2193, %s2194
          %s2196 = smul.addr %s2195, 4
          %s2197 = scalar_lea.vmem %s5, %s2196
          // Predicated region
          $region90: #{tpu_custom_call.1} parent=88 // pred_check
            _
          $region91: #{tpu_custom_call.1} parent=88 // pred_check_branch
            %2199 = sbr.rel (0) target = $region93
          $region92: #{tpu_custom_call.1} parent=88 // pred_region
            // Predicated region
            $region94: #{tpu_custom_call.1} parent=92 // pred_check
              _
            $region95: #{tpu_custom_call.1} parent=92 // pred_check_branch
              %2201 = sbr.rel target = $region97
            $region96: #{tpu_custom_call.1} parent=92 // pred_region
              // Predicated region
              $region109: #{tpu_custom_call.1} parent=96 // pred_check
                _
              $region110: #{tpu_custom_call.1} parent=96 // pred_check_branch
                %2247 = sbr.rel (0) target = $region112
              $region111: #{tpu_custom_call.1} parent=96 // pred_region
                loop: start=0, step=1, limit=1
                $region113: #{tpu_custom_call.1} parent=111 // loop_pre_header
                  _
                $region114: #{tpu_custom_call.1} parent=111 // loop_header
                  %s2249 = sphi 0, %s2253
                  %p2250 = scmp.ge.s32.totalorder %s2249, 1
                  %s2254 = sphi %s2076, %s2076
                  %s2255 = sphi %s2197, %s2197
                $region115: #{tpu_custom_call.1} parent=111 // loop_header_branch
                  %2252 = sbr.rel (%p2250) target = $region119
                $region116: #{tpu_custom_call.1} parent=111 // loop_body
                  _
                $region117: #{tpu_custom_call.1} parent=111 // loop_footer
                  %s2253 = sadd.s32 1, %s2249
                $region118: #{tpu_custom_call.1} parent=111 // loop_footer_branch
                  %2248 = sbr.rel target = $region114
                $region119: #{tpu_custom_call.1} parent=111 // loop_exit
                  _
                %s2257 = ssub.s32 16, 1
                loop: start=0, step=1, limit=1
                $region120: #{tpu_custom_call.1} parent=111 // loop_pre_header
                  _
                $region121: #{tpu_custom_call.1} parent=111 // loop_header
                  %s2259 = sphi 0, %s2263
                  %p2260 = scmp.ge.s32.totalorder %s2259, 1
                  %s2264 = sphi %s2076, %s2076
                  %s2265 = sphi %s2197, %s2197
                $region122: #{tpu_custom_call.1} parent=111 // loop_header_branch
                  %2262 = sbr.rel (%p2260) target = $region126
                $region123: #{tpu_custom_call.1} parent=111 // loop_body
                  %v2266 = vld [vmem:[%s2264] sm:%s2257]
                  %2267 = vst [vmem:[%s2265] sm:%s2257] %v2266
                  %v2268 = vld [vmem:[%s2264 + $0x4] sm:%s2257]
                  %2269 = vst [vmem:[%s2265 + $0x4] sm:%s2257] %v2268
                  %v2270 = vld [vmem:[%s2264 + $0x8] sm:%s2257]
                  %2271 = vst [vmem:[%s2265 + $0x8] sm:%s2257] %v2270
                  %v2272 = vld [vmem:[%s2264 + $0xc] sm:%s2257]
                  %2273 = vst [vmem:[%s2265 + $0xc] sm:%s2257] %v2272
                  %v2274 = vld [vmem:[%s2264 + $0x10] sm:%s2257]
                  %2275 = vst [vmem:[%s2265 + $0x20] sm:%s2257] %v2274
                  %v2276 = vld [vmem:[%s2264 + $0x14] sm:%s2257]
                  %2277 = vst [vmem:[%s2265 + $0x24] sm:%s2257] %v2276
                  %v2278 = vld [vmem:[%s2264 + $0x18] sm:%s2257]
                  %2279 = vst [vmem:[%s2265 + $0x28] sm:%s2257] %v2278
                  %v2280 = vld [vmem:[%s2264 + $0x1c] sm:%s2257]
                  %2281 = vst [vmem:[%s2265 + $0x2c] sm:%s2257] %v2280
                  %v2282 = vld [vmem:[%s2264 + $0x20] sm:%s2257]
                  %2283 = vst [vmem:[%s2265 + $0x40] sm:%s2257] %v2282
                  %v2284 = vld [vmem:[%s2264 + $0x24] sm:%s2257]
                  %2285 = vst [vmem:[%s2265 + $0x44] sm:%s2257] %v2284
                  %v2286 = vld [vmem:[%s2264 + $0x28] sm:%s2257]
                  %2287 = vst [vmem:[%s2265 + $0x48] sm:%s2257] %v2286
                  %v2288 = vld [vmem:[%s2264 + $0x2c] sm:%s2257]
                  %2289 = vst [vmem:[%s2265 + $0x4c] sm:%s2257] %v2288
                  %v2290 = vld [vmem:[%s2264 + $0x30] sm:%s2257]
                  %2291 = vst [vmem:[%s2265 + $0x60] sm:%s2257] %v2290
                  %v2292 = vld [vmem:[%s2264 + $0x34] sm:%s2257]
                  %2293 = vst [vmem:[%s2265 + $0x64] sm:%s2257] %v2292
                  %v2294 = vld [vmem:[%s2264 + $0x38] sm:%s2257]
                  %2295 = vst [vmem:[%s2265 + $0x68] sm:%s2257] %v2294
                  %v2296 = vld [vmem:[%s2264 + $0x3c] sm:%s2257]
                  %2297 = vst [vmem:[%s2265 + $0x6c] sm:%s2257] %v2296
                $region124: #{tpu_custom_call.1} parent=111 // loop_footer
                  %s2263 = sadd.s32 1, %s2259
                $region125: #{tpu_custom_call.1} parent=111 // loop_footer_branch
                  %2258 = sbr.rel target = $region121
                $region126: #{tpu_custom_call.1} parent=111 // loop_exit
                  _
              $region112: #{tpu_custom_call.1} parent=96 // pred_fallthru
                _
            $region97: #{tpu_custom_call.1} parent=92 // pred_fallthru
              _
            // Predicated region
            $region98: #{tpu_custom_call.1} parent=92 // pred_check
              _
            $region99: #{tpu_custom_call.1} parent=92 // pred_check_branch
              %2203 = sbr.rel (0) target = $region101
            $region100: #{tpu_custom_call.1} parent=92 // pred_region
              %s2205 = ssub.s32 16, 1
              loop: start=0, step=1, limit=1
              $region102: #{tpu_custom_call.1} parent=100 // loop_pre_header
                _
              $region103: #{tpu_custom_call.1} parent=100 // loop_header
                %s2207 = sphi 0, %s2211
                %p2208 = scmp.ge.s32.totalorder %s2207, 1
                %s2212 = sphi %s2076, %s2076
                %s2213 = sphi %s2197, %s2197
              $region104: #{tpu_custom_call.1} parent=100 // loop_header_branch
                %2210 = sbr.rel (%p2208) target = $region108
              $region105: #{tpu_custom_call.1} parent=100 // loop_body
                %v2214 = vld [vmem:[%s2212] sm:%s2205]
                %2215 = vst [vmem:[%s2213] sm:%s2205] %v2214
                %v2216 = vld [vmem:[%s2212 + $0x4] sm:%s2205]
                %2217 = vst [vmem:[%s2213 + $0x4] sm:%s2205] %v2216
                %v2218 = vld [vmem:[%s2212 + $0x8] sm:%s2205]
                %2219 = vst [vmem:[%s2213 + $0x8] sm:%s2205] %v2218
                %v2220 = vld [vmem:[%s2212 + $0xc] sm:%s2205]
                %2221 = vst [vmem:[%s2213 + $0xc] sm:%s2205] %v2220
                %v2222 = vld [vmem:[%s2212 + $0x10] sm:%s2205]
                %2223 = vst [vmem:[%s2213 + $0x20] sm:%s2205] %v2222
                %v2224 = vld [vmem:[%s2212 + $0x14] sm:%s2205]
                %2225 = vst [vmem:[%s2213 + $0x24] sm:%s2205] %v2224
                %v2226 = vld [vmem:[%s2212 + $0x18] sm:%s2205]
                %2227 = vst [vmem:[%s2213 + $0x28] sm:%s2205] %v2226
                %v2228 = vld [vmem:[%s2212 + $0x1c] sm:%s2205]
                %2229 = vst [vmem:[%s2213 + $0x2c] sm:%s2205] %v2228
                %v2230 = vld [vmem:[%s2212 + $0x20] sm:%s2205]
                %2231 = vst [vmem:[%s2213 + $0x40] sm:%s2205] %v2230
                %v2232 = vld [vmem:[%s2212 + $0x24] sm:%s2205]
                %2233 = vst [vmem:[%s2213 + $0x44] sm:%s2205] %v2232
                %v2234 = vld [vmem:[%s2212 + $0x28] sm:%s2205]
                %2235 = vst [vmem:[%s2213 + $0x48] sm:%s2205] %v2234
                %v2236 = vld [vmem:[%s2212 + $0x2c] sm:%s2205]
                %2237 = vst [vmem:[%s2213 + $0x4c] sm:%s2205] %v2236
                %v2238 = vld [vmem:[%s2212 + $0x30] sm:%s2205]
                %2239 = vst [vmem:[%s2213 + $0x60] sm:%s2205] %v2238
                %v2240 = vld [vmem:[%s2212 + $0x34] sm:%s2205]
                %2241 = vst [vmem:[%s2213 + $0x64] sm:%s2205] %v2240
                %v2242 = vld [vmem:[%s2212 + $0x38] sm:%s2205]
                %2243 = vst [vmem:[%s2213 + $0x68] sm:%s2205] %v2242
                %v2244 = vld [vmem:[%s2212 + $0x3c] sm:%s2205]
                %2245 = vst [vmem:[%s2213 + $0x6c] sm:%s2205] %v2244
              $region106: #{tpu_custom_call.1} parent=100 // loop_footer
                %s2211 = sadd.s32 1, %s2207
              $region107: #{tpu_custom_call.1} parent=100 // loop_footer_branch
                %2206 = sbr.rel target = $region103
              $region108: #{tpu_custom_call.1} parent=100 // loop_exit
                _
            $region101: #{tpu_custom_call.1} parent=92 // pred_fallthru
              _
          $region93: #{tpu_custom_call.1} parent=88 // pred_fallthru
            _
          %2298 = vnop
        $region89: #{tpu_custom_call.1} parent=35 // pred_fallthru
          _
        // Predicated region
        $region127: #{tpu_custom_call.1} parent=35 // pred_check
          %p2299 = pneg %p201
        $region128: #{tpu_custom_call.1} parent=35 // pred_check_branch
          %2301 = sbr.rel (%p2299) target = $region130
        $region129: #{tpu_custom_call.1} parent=35 // pred_region
          %s2302 = smul.u32 4, %s27
          %s2303 = smul.addr %s26, 32
          %s2304 = sadd.s32 %s2302, %s2303
          %s2305 = smul.addr %s2304, 4
          %s2306 = scalar_lea.vmem %s6, %s2305
          // Predicated region
          $region131: #{tpu_custom_call.1} parent=129 // pred_check
            _
          $region132: #{tpu_custom_call.1} parent=129 // pred_check_branch
            %2308 = sbr.rel (0) target = $region134
          $region133: #{tpu_custom_call.1} parent=129 // pred_region
            // Predicated region
            $region135: #{tpu_custom_call.1} parent=133 // pred_check
              _
            $region136: #{tpu_custom_call.1} parent=133 // pred_check_branch
              %2310 = sbr.rel target = $region138
            $region137: #{tpu_custom_call.1} parent=133 // pred_region
              // Predicated region
              $region150: #{tpu_custom_call.1} parent=137 // pred_check
                _
              $region151: #{tpu_custom_call.1} parent=137 // pred_check_branch
                %2356 = sbr.rel (0) target = $region153
              $region152: #{tpu_custom_call.1} parent=137 // pred_region
                loop: start=0, step=1, limit=1
                $region154: #{tpu_custom_call.1} parent=152 // loop_pre_header
                  _
                $region155: #{tpu_custom_call.1} parent=152 // loop_header
                  %s2358 = sphi 0, %s2362
                  %p2359 = scmp.ge.s32.totalorder %s2358, 1
                  %s2363 = sphi %s2080, %s2080
                  %s2364 = sphi %s2306, %s2306
                $region156: #{tpu_custom_call.1} parent=152 // loop_header_branch
                  %2361 = sbr.rel (%p2359) target = $region160
                $region157: #{tpu_custom_call.1} parent=152 // loop_body
                  _
                $region158: #{tpu_custom_call.1} parent=152 // loop_footer
                  %s2362 = sadd.s32 1, %s2358
                $region159: #{tpu_custom_call.1} parent=152 // loop_footer_branch
                  %2357 = sbr.rel target = $region155
                $region160: #{tpu_custom_call.1} parent=152 // loop_exit
                  _
                %s2366 = ssub.s32 16, 1
                loop: start=0, step=1, limit=1
                $region161: #{tpu_custom_call.1} parent=152 // loop_pre_header
                  _
                $region162: #{tpu_custom_call.1} parent=152 // loop_header
                  %s2368 = sphi 0, %s2372
                  %p2369 = scmp.ge.s32.totalorder %s2368, 1
                  %s2373 = sphi %s2080, %s2080
                  %s2374 = sphi %s2306, %s2306
                $region163: #{tpu_custom_call.1} parent=152 // loop_header_branch
                  %2371 = sbr.rel (%p2369) target = $region167
                $region164: #{tpu_custom_call.1} parent=152 // loop_body
                  %v2375 = vld [vmem:[%s2373] sm:%s2366]
                  %2376 = vst [vmem:[%s2374] sm:%s2366] %v2375
                  %v2377 = vld [vmem:[%s2373 + $0x4] sm:%s2366]
                  %2378 = vst [vmem:[%s2374 + $0x4] sm:%s2366] %v2377
                  %v2379 = vld [vmem:[%s2373 + $0x8] sm:%s2366]
                  %2380 = vst [vmem:[%s2374 + $0x8] sm:%s2366] %v2379
                  %v2381 = vld [vmem:[%s2373 + $0xc] sm:%s2366]
                  %2382 = vst [vmem:[%s2374 + $0xc] sm:%s2366] %v2381
                  %v2383 = vld [vmem:[%s2373 + $0x10] sm:%s2366]
                  %2384 = vst [vmem:[%s2374 + $0x20] sm:%s2366] %v2383
                  %v2385 = vld [vmem:[%s2373 + $0x14] sm:%s2366]
                  %2386 = vst [vmem:[%s2374 + $0x24] sm:%s2366] %v2385
                  %v2387 = vld [vmem:[%s2373 + $0x18] sm:%s2366]
                  %2388 = vst [vmem:[%s2374 + $0x28] sm:%s2366] %v2387
                  %v2389 = vld [vmem:[%s2373 + $0x1c] sm:%s2366]
                  %2390 = vst [vmem:[%s2374 + $0x2c] sm:%s2366] %v2389
                  %v2391 = vld [vmem:[%s2373 + $0x20] sm:%s2366]
                  %2392 = vst [vmem:[%s2374 + $0x40] sm:%s2366] %v2391
                  %v2393 = vld [vmem:[%s2373 + $0x24] sm:%s2366]
                  %2394 = vst [vmem:[%s2374 + $0x44] sm:%s2366] %v2393
                  %v2395 = vld [vmem:[%s2373 + $0x28] sm:%s2366]
                  %2396 = vst [vmem:[%s2374 + $0x48] sm:%s2366] %v2395
                  %v2397 = vld [vmem:[%s2373 + $0x2c] sm:%s2366]
                  %2398 = vst [vmem:[%s2374 + $0x4c] sm:%s2366] %v2397
                  %v2399 = vld [vmem:[%s2373 + $0x30] sm:%s2366]
                  %2400 = vst [vmem:[%s2374 + $0x60] sm:%s2366] %v2399
                  %v2401 = vld [vmem:[%s2373 + $0x34] sm:%s2366]
                  %2402 = vst [vmem:[%s2374 + $0x64] sm:%s2366] %v2401
                  %v2403 = vld [vmem:[%s2373 + $0x38] sm:%s2366]
                  %2404 = vst [vmem:[%s2374 + $0x68] sm:%s2366] %v2403
                  %v2405 = vld [vmem:[%s2373 + $0x3c] sm:%s2366]
                  %2406 = vst [vmem:[%s2374 + $0x6c] sm:%s2366] %v2405
                $region165: #{tpu_custom_call.1} parent=152 // loop_footer
                  %s2372 = sadd.s32 1, %s2368
                $region166: #{tpu_custom_call.1} parent=152 // loop_footer_branch
                  %2367 = sbr.rel target = $region162
                $region167: #{tpu_custom_call.1} parent=152 // loop_exit
                  _
              $region153: #{tpu_custom_call.1} parent=137 // pred_fallthru
                _
            $region138: #{tpu_custom_call.1} parent=133 // pred_fallthru
              _
            // Predicated region
            $region139: #{tpu_custom_call.1} parent=133 // pred_check
              _
            $region140: #{tpu_custom_call.1} parent=133 // pred_check_branch
              %2312 = sbr.rel (0) target = $region142
            $region141: #{tpu_custom_call.1} parent=133 // pred_region
              %s2314 = ssub.s32 16, 1
              loop: start=0, step=1, limit=1
              $region143: #{tpu_custom_call.1} parent=141 // loop_pre_header
                _
              $region144: #{tpu_custom_call.1} parent=141 // loop_header
                %s2316 = sphi 0, %s2320
                %p2317 = scmp.ge.s32.totalorder %s2316, 1
                %s2321 = sphi %s2080, %s2080
                %s2322 = sphi %s2306, %s2306
              $region145: #{tpu_custom_call.1} parent=141 // loop_header_branch
                %2319 = sbr.rel (%p2317) target = $region149
              $region146: #{tpu_custom_call.1} parent=141 // loop_body
                %v2323 = vld [vmem:[%s2321] sm:%s2314]
                %2324 = vst [vmem:[%s2322] sm:%s2314] %v2323
                %v2325 = vld [vmem:[%s2321 + $0x4] sm:%s2314]
                %2326 = vst [vmem:[%s2322 + $0x4] sm:%s2314] %v2325
                %v2327 = vld [vmem:[%s2321 + $0x8] sm:%s2314]
                %2328 = vst [vmem:[%s2322 + $0x8] sm:%s2314] %v2327
                %v2329 = vld [vmem:[%s2321 + $0xc] sm:%s2314]
                %2330 = vst [vmem:[%s2322 + $0xc] sm:%s2314] %v2329
                %v2331 = vld [vmem:[%s2321 + $0x10] sm:%s2314]
                %2332 = vst [vmem:[%s2322 + $0x20] sm:%s2314] %v2331
                %v2333 = vld [vmem:[%s2321 + $0x14] sm:%s2314]
                %2334 = vst [vmem:[%s2322 + $0x24] sm:%s2314] %v2333
                %v2335 = vld [vmem:[%s2321 + $0x18] sm:%s2314]
                %2336 = vst [vmem:[%s2322 + $0x28] sm:%s2314] %v2335
                %v2337 = vld [vmem:[%s2321 + $0x1c] sm:%s2314]
                %2338 = vst [vmem:[%s2322 + $0x2c] sm:%s2314] %v2337
                %v2339 = vld [vmem:[%s2321 + $0x20] sm:%s2314]
                %2340 = vst [vmem:[%s2322 + $0x40] sm:%s2314] %v2339
                %v2341 = vld [vmem:[%s2321 + $0x24] sm:%s2314]
                %2342 = vst [vmem:[%s2322 + $0x44] sm:%s2314] %v2341
                %v2343 = vld [vmem:[%s2321 + $0x28] sm:%s2314]
                %2344 = vst [vmem:[%s2322 + $0x48] sm:%s2314] %v2343
                %v2345 = vld [vmem:[%s2321 + $0x2c] sm:%s2314]
                %2346 = vst [vmem:[%s2322 + $0x4c] sm:%s2314] %v2345
                %v2347 = vld [vmem:[%s2321 + $0x30] sm:%s2314]
                %2348 = vst [vmem:[%s2322 + $0x60] sm:%s2314] %v2347
                %v2349 = vld [vmem:[%s2321 + $0x34] sm:%s2314]
                %2350 = vst [vmem:[%s2322 + $0x64] sm:%s2314] %v2349
                %v2351 = vld [vmem:[%s2321 + $0x38] sm:%s2314]
                %2352 = vst [vmem:[%s2322 + $0x68] sm:%s2314] %v2351
                %v2353 = vld [vmem:[%s2321 + $0x3c] sm:%s2314]
                %2354 = vst [vmem:[%s2322 + $0x6c] sm:%s2314] %v2353
              $region147: #{tpu_custom_call.1} parent=141 // loop_footer
                %s2320 = sadd.s32 1, %s2316
              $region148: #{tpu_custom_call.1} parent=141 // loop_footer_branch
                %2315 = sbr.rel target = $region144
              $region149: #{tpu_custom_call.1} parent=141 // loop_exit
                _
            $region142: #{tpu_custom_call.1} parent=133 // pred_fallthru
              _
          $region134: #{tpu_custom_call.1} parent=129 // pred_fallthru
            _
          %2407 = vnop
        $region130: #{tpu_custom_call.1} parent=35 // pred_fallthru
          _
      $region36: #{tpu_custom_call.1} parent=5 // pred_fallthru
        _
      %p2408 = scmp.le.s32.totalorder 2, %s17
      // Predicated region
      $region168: #{tpu_custom_call.1} parent=5 // pred_check
        %p2409 = pneg %p2408
      $region169: #{tpu_custom_call.1} parent=5 // pred_check_branch
        %2411 = sbr.rel (%p2409) target = $region171
      $region170: #{tpu_custom_call.1} parent=5 // pred_region
        %s2412 = ssub.s32 %s17, 2
        // Predicated region
        $region172: #{tpu_custom_call.1} parent=170 // pred_check
          %p2413 = pneg %p151
        $region173: #{tpu_custom_call.1} parent=170 // pred_check_branch
          %2415 = sbr.rel (%p2413) target = $region175
        $region174: #{tpu_custom_call.1} parent=170 // pred_region
          %s2416 = sand.u32 %s136, 1
          %s2417 = sand.u32 %s136, 1
          %s2418 = smul.addr %s2417, 64
          %s2419 = scalar_lea.vmem [#allocation6], %s2418
        $region175: #{tpu_custom_call.1} parent=170 // pred_fallthru
          _
        // Predicated region
        $region176: #{tpu_custom_call.1} parent=170 // pred_check
          %p2420 = pneg %p179
        $region177: #{tpu_custom_call.1} parent=170 // pred_check_branch
          %2422 = sbr.rel (%p2420) target = $region179
        $region178: #{tpu_custom_call.1} parent=170 // pred_region
          %s2423 = sand.u32 %s164, 1
          %s2424 = sand.u32 %s164, 1
          %s2425 = smul.addr %s2424, 64
          %s2426 = scalar_lea.vmem [#allocation7], %s2425
        $region179: #{tpu_custom_call.1} parent=170 // pred_fallthru
          _
        // Predicated region
        $region180: #{tpu_custom_call.1} parent=170 // pred_check
          %p2427 = pneg %p207
        $region181: #{tpu_custom_call.1} parent=170 // pred_check_branch
          %2429 = sbr.rel (%p2427) target = $region183
        $region182: #{tpu_custom_call.1} parent=170 // pred_region
          %s2430 = sand.u32 %s192, 1
          %s2431 = sand.u32 %s192, 1
          %s2432 = smul.addr %s2431, 64
          %s2433 = scalar_lea.vmem [#allocation8], %s2432
        $region183: #{tpu_custom_call.1} parent=170 // pred_fallthru
          _
      $region171: #{tpu_custom_call.1} parent=5 // pred_fallthru
        _
    $region6: #{tpu_custom_call.1} parent=1 // loop_footer
      %s21 = sadd.s32 1, %s17
    $region7: #{tpu_custom_call.1} parent=1 // loop_footer_branch
      %16 = sbr.rel target = $region3
    $region8: #{tpu_custom_call.1} parent=1 // loop_exit
      _
    %2434 = vsyncpa [#allocation3], 1
    %s2435 = scalar_lea.sflag [#allocation3], 1
    %2436 = vsyncpa %s2435, 1
    %2437 = vsyncpa [#allocation5], 1

</llo_original>
